<compile_context>
chip_gen: v7x
topology: tpu7x:2x2x1
jax: 0.10.0
libtpu: 0.0.40
codegen_flags: <defaults>
</compile_context>

<pallas_src>
import math

import jax
import jax.numpy as jnp
import numpy as np
from jax import lax
from jax.experimental import pallas as pl
from jax.experimental.pallas import tpu as pltpu


# ----------------------------- Pallas kernels --------------------------------
def conv1_bn_relu_kernel(x_ref, w1_ref, b1_ref, h1_ref):
    """h1 = relu(x @ w1_folded + b1), computed ONCE per spatial position.

    x_ref  : (TM, Cin)  bf16 input rows (NHWC flattened)
    w1_ref : (Cin, Cm)  bf16 conv1 weight with bn1 scale folded in
    b1_ref : (1, Cm)    f32 folded bn1 bias
    h1_ref : (TM, Cm)   bf16 output
    """
    acc = jnp.dot(x_ref[...], w1_ref[...], preferred_element_type=jnp.float32)
    h1_ref[...] = jnp.maximum(acc + b1_ref[...], 0.0).astype(h1_ref.dtype)


def conv2_conv3_residual_kernel(hcat_ref, xid_ref, w2_ref, b2_ref,
                                w3_ref, b3_ref, out_ref):
    """Fused conv2 (3x3 as ONE K=9*Cm matmul) + bn2 + relu + conv3 + bn3 + residual + relu.

    hcat_ref : (TM, 9*Cm)   bf16 channel-concatenated shifted h1 taps
    xid_ref  : (TM, Cout)   f32 identity (residual) rows
    w2_ref   : (9*Cm, Cm)   bf16 conv2 weight (taps stacked on K), bn2 scale folded
    b2_ref   : (1, Cm)      f32 folded bn2 bias
    w3_ref   : (Cm, Cout)   bf16 conv3 weight, bn3 scale folded
    b3_ref   : (1, Cout)    f32 folded bn3 bias
    out_ref  : (TM, Cout)   f32 output
    """
    h2 = jnp.dot(hcat_ref[...], w2_ref[...], preferred_element_type=jnp.float32)
    h2 = jnp.maximum(h2 + b2_ref[...], 0.0)
    h3 = jnp.dot(h2.astype(jnp.bfloat16), w3_ref[...],
                 preferred_element_type=jnp.float32)
    h3 = h3 + b3_ref[...]
    out_ref[...] = jnp.maximum(h3 + xid_ref[...], 0.0).astype(out_ref.dtype)


# ------------------------------ host helpers ----------------------------------
def _fold_bn(gamma, beta, mean, var, eps=1e-5):
    scale = gamma * lax.rsqrt(var + eps)
    bias = beta - mean * scale
    return scale, bias


def fold_params(p, eps=1e-5):
    """Fold eval-mode BN scales into the conv weights (bf16), keep biases in f32."""
    cm = p["w1"].shape[1]
    cout = p["w3"].shape[1]
    s1, b1 = _fold_bn(p["g1"], p["be1"], p["mu1"], p["var1"], eps)
    s2, b2 = _fold_bn(p["g2"], p["be2"], p["mu2"], p["var2"], eps)
    s3, b3 = _fold_bn(p["g3"], p["be3"], p["mu3"], p["var3"], eps)
    return {
        "w1": (p["w1"] * s1[None, :]).astype(jnp.bfloat16),                    # (Cin, Cm)
        "b1": b1.reshape(1, cm).astype(jnp.float32),
        "w2": (p["w2"] * s2[None, None, :]).reshape(9 * cm, cm)
              .astype(jnp.bfloat16),                                           # (9*Cm, Cm)
        "b2": b2.reshape(1, cm).astype(jnp.float32),
        "w3": (p["w3"] * s3[None, :]).astype(jnp.bfloat16),                    # (Cm, Cout)
        "b3": b3.reshape(1, cout).astype(jnp.float32),
    }


def _build_tap_concat(h1_nhwc):
    """Zero-pad h1 spatially and concat the 9 shifted views along channels.

    Pure data movement (no FLOPs); done in XLA between the two pallas_calls.
    Because h1 is post-ReLU, zero padding is exactly the SAME-conv halo.
    """
    n, h, w, cm = h1_nhwc.shape
    hp = jnp.pad(h1_nhwc, ((0, 0), (1, 1), (1, 1), (0, 0)))
    taps = [hp[:, di:di + h, dj:dj + w, :].reshape(n * h * w, cm)
            for di in range(3) for dj in range(3)]
    return jnp.concatenate(taps, axis=-1)            # (M, 9*Cm), same dtype as h1


def _pick_row_tile(m, max_rows=256):
    # Largest power-of-two row tile <= max_rows dividing M.  For realistic ResNet
    # sizes use ~1024-2048 rows on v7x (64 MiB VMEM) and ~4096 on v5e/v6e.
    assert m % 8 == 0, "M = N*H*W must be a multiple of 8 (sublane tiling)"
    return math.gcd(m, max_rows)


# ------------------------------ forward wrapper --------------------------------
def bottleneck_forward(x_nchw, p):
    n, cin, h, w = x_nchw.shape
    cm = p["w1"].shape[1]
    cout = p["w3"].shape[1]
    assert cin == cout, "identity residual requires Cin == Cout (stride=1, no downsample)"
    m = n * h * w

    fp = fold_params(p)

    x_nhwc = jnp.transpose(x_nchw, (0, 2, 3, 1)).astype(jnp.float32)   # NHWC
    x_flat = x_nhwc.reshape(m, cin)
    xid = x_flat                                   # identity path stays f32
    xb = x_flat.astype(jnp.bfloat16)               # matmul operand

    tm = _pick_row_tile(m)
    grid = (m // tm,)
    cparams = pltpu.CompilerParams(
        dimension_semantics=("parallel",),         # rows are independent -> megacore
        vmem_limit_bytes=32 * 1024 * 1024,         # safe on v5e/v6e/v7x
    )

    # ---- stage 1: conv1 (1x1) + bn1 + relu, computed once ----
    h1 = pl.pallas_call(
        conv1_bn_relu_kernel,
        out_shape=jax.ShapeDtypeStruct((m, cm), jnp.bfloat16),
        grid=grid,
        in_specs=[
            pl.BlockSpec((tm, cin), lambda i: (i, 0)),      # x rows (pipelined)
            pl.BlockSpec((cin, cm), lambda i: (0, 0)),      # w1 (resident)
            pl.BlockSpec((1, cm), lambda i: (0, 0)),        # b1 (resident)
        ],
        out_specs=pl.BlockSpec((tm, cm), lambda i: (i, 0)),
        compiler_params=cparams,
        cost_estimate=pl.CostEstimate(
            flops=2 * m * cin * cm,
            transcendentals=0,
            bytes_accessed=2 * m * (cin + cm) + 2 * cin * cm),
    )(xb, fp["w1"], fp["b1"])

    # ---- glue: 9 shifted views of the (small, post-ReLU) h1, concat on channels ----
    h1cat = _build_tap_concat(h1.reshape(n, h, w, cm))       # (M, 9*Cm) bf16

    # ---- stage 2: conv2 (3x3, one K=9*Cm matmul) + bn2 + relu + conv3 + bn3 + residual + relu ----
    out_flat = pl.pallas_call(
        conv2_conv3_residual_kernel,
        out_shape=jax.ShapeDtypeStruct((m, cout), jnp.float32),
        grid=grid,
        in_specs=[
            pl.BlockSpec((tm, 9 * cm), lambda i: (i, 0)),    # concatenated taps (pipelined)
            pl.BlockSpec((tm, cout), lambda i: (i, 0)),      # identity rows (pipelined)
            pl.BlockSpec((9 * cm, cm), lambda i: (0, 0)),    # w2 (resident)
            pl.BlockSpec((1, cm), lambda i: (0, 0)),         # b2
            pl.BlockSpec((cm, cout), lambda i: (0, 0)),      # w3 (resident)
            pl.BlockSpec((1, cout), lambda i: (0, 0)),       # b3
        ],
        out_specs=pl.BlockSpec((tm, cout), lambda i: (i, 0)),
        compiler_params=cparams,
        cost_estimate=pl.CostEstimate(
            flops=2 * m * (9 * cm * cm + cm * cout),
            transcendentals=0,
            bytes_accessed=m * (2 * 9 * cm + 4 * cout + 4 * cout)
                           + 2 * (9 * cm * cm + cm * cout)),
    )(h1cat, xid, fp["w2"], fp["b2"], fp["w3"], fp["b3"])

    out = out_flat.reshape(n, h, w, cout)
    return jnp.transpose(out, (0, 3, 1, 2))                  # back to NCHW


# --------------------- references (pure JAX, no Pallas) ------------------------
def bottleneck_emulated(x_nchw, p):
    """Exact numerical mirror of the Pallas path (bf16 operands, f32 accumulation)."""
    n, cin, h, w = x_nchw.shape
    cm = p["w1"].shape[1]
    cout = p["w3"].shape[1]
    m = n * h * w
    fp = fold_params(p)

    x = jnp.transpose(x_nchw, (0, 2, 3, 1)).astype(jnp.float32)
    xid = x.reshape(m, cin)
    xb = xid.astype(jnp.bfloat16)

    h1 = jnp.maximum(
        jnp.dot(xb, fp["w1"], preferred_element_type=jnp.float32) + fp["b1"],
        0.0).astype(jnp.bfloat16)
    h1cat = _build_tap_concat(h1.reshape(n, h, w, cm))
    h2 = jnp.maximum(
        jnp.dot(h1cat, fp["w2"], preferred_element_type=jnp.float32) + fp["b2"],
        0.0)
    h3 = jnp.dot(h2.astype(jnp.bfloat16), fp["w3"],
                 preferred_element_type=jnp.float32) + fp["b3"]
    out = jnp.maximum(h3 + xid, 0.0)
    return jnp.transpose(out.reshape(n, h, w, cout), (0, 3, 1, 2))


def bottleneck_reference_f32(x_nchw, p, eps=1e-5):
    """Full-precision reference with true module semantics (eval-mode BN)."""
    prec = lax.Precision.HIGHEST
    x = jnp.transpose(x_nchw, (0, 2, 3, 1)).astype(jnp.float32)
    cm = p["w1"].shape[1]

    def bn(v, g, be, mu, var):
        return (v - mu) * lax.rsqrt(var + eps) * g + be

    h = jnp.einsum("nhwc,cd->nhwd", x, p["w1"], precision=prec)
    h = jnp.maximum(bn(h, p["g1"], p["be1"], p["mu1"], p["var1"]), 0.0)
    w2_hwio = p["w2"].reshape(3, 3, cm, cm)
    h = lax.conv_general_dilated(h, w2_hwio, (1, 1), "SAME",
                                 dimension_numbers=("NHWC", "HWIO", "NHWC"),
                                 precision=prec)
    h = jnp.maximum(bn(h, p["g2"], p["be2"], p["mu2"], p["var2"]), 0.0)
    h = jnp.einsum("nhwc,cd->nhwd", h, p["w3"], precision=prec)
    h = bn(h, p["g3"], p["be3"], p["mu3"], p["var3"])
    out = jnp.maximum(h + x, 0.0)
    return jnp.transpose(out, (0, 3, 1, 2))


# ---------------------------------- main ---------------------------------------
if __name__ == "__main__":
    # Small but lane-dense configuration: planes=32, expansion=4 -> Cin=Cout=128, Cm=32.
    N, H, W = 2, 16, 16
    planes, expansion = 32, 4
    Cin = Cout = planes * expansion        # 128 (lane-dense residual/output)
    Cm = planes                            # 32

    key = jax.random.PRNGKey(0)
    ks = jax.random.split(key, 16)

    params = {
        "w1": 0.1 * jax.random.normal(ks[0], (Cin, Cm), jnp.float32),
        "w2": 0.1 * jax.random.normal(ks[1], (9, Cm, Cm), jnp.float32),
        "w3": 0.1 * jax.random.normal(ks[2], (Cm, Cout), jnp.float32),
        "g1": jax.random.uniform(ks[3], (Cm,), jnp.float32, 0.5, 1.5),
        "be1": 0.1 * jax.random.normal(ks[4], (Cm,), jnp.float32),
        "mu1": 0.1 * jax.random.normal(ks[5], (Cm,), jnp.float32),
        "var1": jax.random.uniform(ks[6], (Cm,), jnp.float32, 0.5, 1.5),
        "g2": jax.random.uniform(ks[7], (Cm,), jnp.float32, 0.5, 1.5),
        "be2": 0.1 * jax.random.normal(ks[8], (Cm,), jnp.float32),
        "mu2": 0.1 * jax.random.normal(ks[9], (Cm,), jnp.float32),
        "var2": jax.random.uniform(ks[10], (Cm,), jnp.float32, 0.5, 1.5),
        "g3": jax.random.uniform(ks[11], (Cout,), jnp.float32, 0.5, 1.5),
        "be3": 0.1 * jax.random.normal(ks[12], (Cout,), jnp.float32),
        "mu3": 0.1 * jax.random.normal(ks[13], (Cout,), jnp.float32),
        "var3": jax.random.uniform(ks[14], (Cout,), jnp.float32, 0.5, 1.5),
    }

    x = jax.random.normal(ks[15], (N, Cin, H, W), jnp.float32)     # NCHW input

    fwd = jax.jit(bottleneck_forward)
    out = jax.block_until_ready(fwd(x, params))

    emu = jax.block_until_ready(bottleneck_emulated(x, params))
    ref = jax.block_until_ready(bottleneck_reference_f32(x, params))

    # Tight structural check against the numerics-identical JAX mirror.
    np.testing.assert_allclose(np.asarray(out), np.asarray(emu), rtol=5e-3, atol=5e-3)
    # Sanity check of the bf16 approximation against the full-f32 true reference.
    np.testing.assert_allclose(np.asarray(out), np.asarray(ref), rtol=5e-2, atol=1e-1)

    print("KERNEL_OK")
</pallas_src>

<mosaic_0001>
module attributes {stable_mosaic.version = 11 : i64} {
  func.func @conv1_bn_relu_kernel(%arg0: i32, %arg1: memref<256x128xbf16, #tpu.memory_space<vmem>>, %arg2: memref<128x32xbf16, #tpu.memory_space<vmem>>, %arg3: memref<1x32xf32, #tpu.memory_space<vmem>>, %arg4: memref<256x32xbf16, #tpu.memory_space<vmem>>) attributes {dimension_semantics = [#tpu.dimension_semantics<parallel>], iteration_bounds = array<i64: 2>, scalar_prefetch = 0 : i64, scratch_operands = 0 : i64, tpu.core_type = #tpu.core_type<tc>, window_params = [{transform_indices = @transform_0, window_bounds = array<i64: 256, 128>}, {pipeline_mode = #tpu.pipeline_mode<synchronous>, transform_indices = @transform_1, window_bounds = array<i64: 128, 32>}, {pipeline_mode = #tpu.pipeline_mode<synchronous>, transform_indices = @transform_2, window_bounds = array<i64: 1, 32>}, {transform_indices = @transform_3, window_bounds = array<i64: 256, 32>}]} {
    %c0 = arith.constant 0 : index
    %c0_0 = arith.constant 0 : index
    %0 = vector.load %arg1[%c0, %c0_0] : memref<256x128xbf16, #tpu.memory_space<vmem>>, vector<256x128xbf16>
    %c0_1 = arith.constant 0 : index
    %c0_2 = arith.constant 0 : index
    %1 = vector.load %arg2[%c0_1, %c0_2] : memref<128x32xbf16, #tpu.memory_space<vmem>>, vector<128x32xbf16>
    %cst = arith.constant dense<0.000000e+00> : vector<256x32xf32>
    %2 = tpu.matmul %0, %1, %cst {dimension_numbers = #tpu.dot_dimension_numbers<[1], [0], [0], [1], [0, 0, 1, 1], [], []>} : vector<256x128xbf16>, vector<128x32xbf16>, vector<256x32xf32> -> vector<256x32xf32>
    %c0_3 = arith.constant 0 : index
    %c0_4 = arith.constant 0 : index
    %3 = vector.load %arg3[%c0_3, %c0_4] : memref<1x32xf32, #tpu.memory_space<vmem>>, vector<1x32xf32>
    %4 = vector.broadcast %3 : vector<1x32xf32> to vector<256x32xf32>
    %5 = arith.addf %2, %4 : vector<256x32xf32>
    %cst_5 = arith.constant 0.000000e+00 : f32
    %6 = vector.broadcast %cst_5 : f32 to vector<256x32xf32>
    %7 = arith.maximumf %5, %6 : vector<256x32xf32>
    %8 = arith.truncf %7 : vector<256x32xf32> to vector<256x32xbf16>
    %c0_6 = arith.constant 0 : index
    %c0_7 = arith.constant 0 : index
    %9 = vector.load %arg4[%c0_6, %c0_7] : memref<256x32xbf16, #tpu.memory_space<vmem>>, vector<256x32xbf16>
    tpu.vector_store %arg4[%c0_6, %c0_7], %8 {strides = array<i32>} : memref<256x32xbf16, #tpu.memory_space<vmem>>, vector<256x32xbf16>,
    return
  }
  func.func @transform_0(%arg0: i32) -> (i32, i32) {
    %c0_i32 = arith.constant 0 : i32
    %c0_i32_0 = arith.constant 0 : i32
    return %arg0, %c0_i32 : i32, i32
  }
  func.func @transform_1(%arg0: i32) -> (i32, i32) {
    %c0_i32 = arith.constant 0 : i32
    %c0_i32_0 = arith.constant 0 : i32
    %c0_i32_1 = arith.constant 0 : i32
    return %c0_i32, %c0_i32_0 : i32, i32
  }
  func.func @transform_2(%arg0: i32) -> (i32, i32) {
    %c0_i32 = arith.constant 0 : i32
    %c0_i32_0 = arith.constant 0 : i32
    %c0_i32_1 = arith.constant 0 : i32
    return %c0_i32, %c0_i32_0 : i32, i32
  }
  func.func @transform_3(%arg0: i32) -> (i32, i32) {
    %c0_i32 = arith.constant 0 : i32
    %c0_i32_0 = arith.constant 0 : i32
    return %arg0, %c0_i32 : i32, i32
  }
}

module attributes {stable_mosaic.version = 11 : i64} {
  func.func @conv2_conv3_residual_kernel(%arg0: i32, %arg1: memref<256x288xbf16, #tpu.memory_space<vmem>>, %arg2: memref<256x128xf32, #tpu.memory_space<vmem>>, %arg3: memref<288x32xbf16, #tpu.memory_space<vmem>>, %arg4: memref<1x32xf32, #tpu.memory_space<vmem>>, %arg5: memref<32x128xbf16, #tpu.memory_space<vmem>>, %arg6: memref<1x128xf32, #tpu.memory_space<vmem>>, %arg7: memref<256x128xf32, #tpu.memory_space<vmem>>) attributes {dimension_semantics = [#tpu.dimension_semantics<parallel>], iteration_bounds = array<i64: 2>, scalar_prefetch = 0 : i64, scratch_operands = 0 : i64, tpu.core_type = #tpu.core_type<tc>, window_params = [{transform_indices = @transform_0, window_bounds = array<i64: 256, 288>}, {transform_indices = @transform_1, window_bounds = array<i64: 256, 128>}, {pipeline_mode = #tpu.pipeline_mode<synchronous>, transform_indices = @transform_2, window_bounds = array<i64: 288, 32>}, {pipeline_mode = #tpu.pipeline_mode<synchronous>, transform_indices = @transform_3, window_bounds = array<i64: 1, 32>}, {pipeline_mode = #tpu.pipeline_mode<synchronous>, transform_indices = @transform_4, window_bounds = array<i64: 32, 128>}, {pipeline_mode = #tpu.pipeline_mode<synchronous>, transform_indices = @transform_5, window_bounds = array<i64: 1, 128>}, {transform_indices = @transform_6, window_bounds = array<i64: 256, 128>}]} {
    %c0 = arith.constant 0 : index
    %c0_0 = arith.constant 0 : index
    %0 = vector.load %arg1[%c0, %c0_0] : memref<256x288xbf16, #tpu.memory_space<vmem>>, vector<256x288xbf16>
    %c0_1 = arith.constant 0 : index
    %c0_2 = arith.constant 0 : index
    %1 = vector.load %arg3[%c0_1, %c0_2] : memref<288x32xbf16, #tpu.memory_space<vmem>>, vector<288x32xbf16>
    %cst = arith.constant dense<0.000000e+00> : vector<256x32xf32>
    %2 = tpu.matmul %0, %1, %cst {dimension_numbers = #tpu.dot_dimension_numbers<[1], [0], [0], [1], [0, 0, 1, 1], [], []>} : vector<256x288xbf16>, vector<288x32xbf16>, vector<256x32xf32> -> vector<256x32xf32>
    %c0_3 = arith.constant 0 : index
    %c0_4 = arith.constant 0 : index
    %3 = vector.load %arg4[%c0_3, %c0_4] : memref<1x32xf32, #tpu.memory_space<vmem>>, vector<1x32xf32>
    %4 = vector.broadcast %3 : vector<1x32xf32> to vector<256x32xf32>
    %5 = arith.addf %2, %4 : vector<256x32xf32>
    %cst_5 = arith.constant 0.000000e+00 : f32
    %6 = vector.broadcast %cst_5 : f32 to vector<256x32xf32>
    %7 = arith.maximumf %5, %6 : vector<256x32xf32>
    %8 = arith.truncf %7 : vector<256x32xf32> to vector<256x32xbf16>
    %c0_6 = arith.constant 0 : index
    %c0_7 = arith.constant 0 : index
    %9 = vector.load %arg5[%c0_6, %c0_7] : memref<32x128xbf16, #tpu.memory_space<vmem>>, vector<32x128xbf16>
    %cst_8 = arith.constant dense<0.000000e+00> : vector<256x128xf32>
    %10 = tpu.matmul %8, %9, %cst_8 {dimension_numbers = #tpu.dot_dimension_numbers<[1], [0], [0], [1], [0, 0, 1, 1], [], []>} : vector<256x32xbf16>, vector<32x128xbf16>, vector<256x128xf32> -> vector<256x128xf32>
    %c0_9 = arith.constant 0 : index
    %c0_10 = arith.constant 0 : index
    %11 = vector.load %arg6[%c0_9, %c0_10] : memref<1x128xf32, #tpu.memory_space<vmem>>, vector<1x128xf32>
    %12 = vector.broadcast %11 : vector<1x128xf32> to vector<256x128xf32>
    %13 = arith.addf %10, %12 : vector<256x128xf32>
    %c0_11 = arith.constant 0 : index
    %c0_12 = arith.constant 0 : index
    %14 = vector.load %arg2[%c0_11, %c0_12] : memref<256x128xf32, #tpu.memory_space<vmem>>, vector<256x128xf32>
    %15 = arith.addf %13, %14 : vector<256x128xf32>
    %cst_13 = arith.constant 0.000000e+00 : f32
    %16 = vector.broadcast %cst_13 : f32 to vector<256x128xf32>
    %17 = arith.maximumf %15, %16 : vector<256x128xf32>
    %c0_14 = arith.constant 0 : index
    %c0_15 = arith.constant 0 : index
    %18 = vector.load %arg7[%c0_14, %c0_15] : memref<256x128xf32, #tpu.memory_space<vmem>>, vector<256x128xf32>
    tpu.vector_store %arg7[%c0_14, %c0_15], %17 {strides = array<i32>} : memref<256x128xf32, #tpu.memory_space<vmem>>, vector<256x128xf32>,
    return
  }
  func.func @transform_0(%arg0: i32) -> (i32, i32) {
    %c0_i32 = arith.constant 0 : i32
    %c0_i32_0 = arith.constant 0 : i32
    return %arg0, %c0_i32 : i32, i32
  }
  func.func @transform_1(%arg0: i32) -> (i32, i32) {
    %c0_i32 = arith.constant 0 : i32
    %c0_i32_0 = arith.constant 0 : i32
    return %arg0, %c0_i32 : i32, i32
  }
  func.func @transform_2(%arg0: i32) -> (i32, i32) {
    %c0_i32 = arith.constant 0 : i32
    %c0_i32_0 = arith.constant 0 : i32
    %c0_i32_1 = arith.constant 0 : i32
    return %c0_i32, %c0_i32_0 : i32, i32
  }
  func.func @transform_3(%arg0: i32) -> (i32, i32) {
    %c0_i32 = arith.constant 0 : i32
    %c0_i32_0 = arith.constant 0 : i32
    %c0_i32_1 = arith.constant 0 : i32
    return %c0_i32, %c0_i32_0 : i32, i32
  }
  func.func @transform_4(%arg0: i32) -> (i32, i32) {
    %c0_i32 = arith.constant 0 : i32
    %c0_i32_0 = arith.constant 0 : i32
    %c0_i32_1 = arith.constant 0 : i32
    return %c0_i32, %c0_i32_0 : i32, i32
  }
  func.func @transform_5(%arg0: i32) -> (i32, i32) {
    %c0_i32 = arith.constant 0 : i32
    %c0_i32_0 = arith.constant 0 : i32
    %c0_i32_1 = arith.constant 0 : i32
    return %c0_i32, %c0_i32_0 : i32, i32
  }
  func.func @transform_6(%arg0: i32) -> (i32, i32) {
    %c0_i32 = arith.constant 0 : i32
    %c0_i32_0 = arith.constant 0 : i32
    return %arg0, %c0_i32 : i32, i32
  }
}

</mosaic_0001>

<llo_original>
// kernel: bottleneck_forward.2
$region0: #{bottleneck_forward.2}
  #allocation0 [shape = 'u32[]', space=smem, size = 0x4, offset = 0x4, fixed_abs, tag = 'smem constant byte address 0x4 - core index']
  #allocation1 [shape = 'u32[144,128]{1,0:T(1,128)}', space=vmem, size = 0x12000, scoped, tag = 'internal scratch']
  %s0 = inlined_call_operand.vmem [shape: bf16[512,128], index: 0, kind: input, shape index: {}]
  %s1 = inlined_call_operand.vmem [shape: bf16[128,32], index: 1, kind: input, shape index: {}]
  %s2 = inlined_call_operand.vmem [shape: f32[1,32], index: 2, kind: input, shape index: {}]
  %s3 = inlined_call_operand.vmem [shape: bf16[512,32], index: 3, kind: output, shape index: {}]
  %s4 = sld [smem:[#allocation0]]
  $region45: #{bottleneck_forward.2} parent=0
    _
  %s6 = ssub.s32 1, %s4
  %s7 = scalar_select 0, %s6, %s4
  loop: start=0, step=1, limit=4
  $region2: #{bottleneck_forward.2} parent=0 // loop_pre_header
    _
  $region3: #{bottleneck_forward.2} parent=0 // loop_header
    %s9 = sphi 0, %s13
    %p10 = scmp.ge.s32.totalorder %s9, 4
    %s19 = sphi 0, %s21
    %s22 = sphi 0, %s19
    %s23 = sphi 0, %s22
    %s39 = sphi 0, %s23
    %s43 = sphi 0, %s43
    %s45 = sphi 0, %s43
    %s46 = sphi 0, %s45
    %s60 = sphi 0, %s46
    %s64 = sphi 0, %s64
    %s66 = sphi 0, %s64
    %s67 = sphi 0, %s66
    %s81 = sphi 0, %s67
    %s87 = sphi 0, %s89
    %s90 = sphi 0, %s87
    %s91 = sphi 0, %s90
    %s107 = sphi 0, %s91
  $region4: #{bottleneck_forward.2} parent=0 // loop_header_branch
    %12 = sbr.rel (%p10) target = $region8
  $region5: #{bottleneck_forward.2} parent=0 // loop_body
    %s14 = ssub.s32 %s9, 1
    %s15 = ssub.s32 %s9, 2
    %s16 = sadd.s32 %s9, 1
    %s17 = ssub.s32 %s9, %s16
    %p18 = scmp.eq.s32.totalorder %s17, 0
    %s20 = sadd.s32 %s19, 1
    %s21 = scalar_select %p18, %s19, %s20
    %p24 = pneg %p18
    %p25 = scmp.eq.s32.totalorder %s9, 1
    %p26 = por %p24, %p25
    %p27 = scmp.ne.s32.totalorder %s19, %s22
    %p28 = scmp.eq.s32.totalorder %s9, 0
    %p29 = por %p27, %p28
    %p30 = scmp.ne.s32.totalorder %s19, %s22
    %p31 = scmp.eq.s32.totalorder %s14, 1
    %p32 = por %p30, %p31
    %p33 = scmp.ne.s32.totalorder %s22, %s23
    %p34 = scmp.eq.s32.totalorder %s14, 0
    %p35 = por %p33, %p34
    %p36 = scmp.ne.s32.totalorder %s22, %s23
    %p37 = scmp.eq.s32.totalorder %s15, 1
    %p38 = por %p36, %p37
    %p40 = scmp.ne.s32.totalorder %s23, %s39
    %p41 = scmp.eq.s32.totalorder %s15, 0
    %p42 = por %p40, %p41
    %s44 = sadd.s32 %s43, 1
    %p47 = scmp.eq.s32.totalorder %s9, 1
    %p48 = scmp.ne.s32.totalorder %s43, %s45
    %p49 = scmp.eq.s32.totalorder %s9, 0
    %p50 = por %p48, %p49
    %p51 = scmp.ne.s32.totalorder %s43, %s45
    %p52 = scmp.eq.s32.totalorder %s14, 1
    %p53 = por %p51, %p52
    %p54 = scmp.ne.s32.totalorder %s45, %s46
    %p55 = scmp.eq.s32.totalorder %s14, 0
    %p56 = por %p54, %p55
    %p57 = scmp.ne.s32.totalorder %s45, %s46
    %p58 = scmp.eq.s32.totalorder %s15, 1
    %p59 = por %p57, %p58
    %p61 = scmp.ne.s32.totalorder %s46, %s60
    %p62 = scmp.eq.s32.totalorder %s15, 0
    %p63 = por %p61, %p62
    %s65 = sadd.s32 %s64, 1
    %p68 = scmp.eq.s32.totalorder %s9, 1
    %p69 = scmp.ne.s32.totalorder %s64, %s66
    %p70 = scmp.eq.s32.totalorder %s9, 0
    %p71 = por %p69, %p70
    %p72 = scmp.ne.s32.totalorder %s64, %s66
    %p73 = scmp.eq.s32.totalorder %s14, 1
    %p74 = por %p72, %p73
    %p75 = scmp.ne.s32.totalorder %s66, %s67
    %p76 = scmp.eq.s32.totalorder %s14, 0
    %p77 = por %p75, %p76
    %p78 = scmp.ne.s32.totalorder %s66, %s67
    %p79 = scmp.eq.s32.totalorder %s15, 1
    %p80 = por %p78, %p79
    %p82 = scmp.ne.s32.totalorder %s67, %s81
    %p83 = scmp.eq.s32.totalorder %s15, 0
    %p84 = por %p82, %p83
    %s85 = ssub.s32 %s9, %s16
    %p86 = scmp.eq.s32.totalorder %s85, 0
    %s88 = sadd.s32 %s87, 1
    %s89 = scalar_select %p86, %s87, %s88
    %p92 = pneg %p86
    %p93 = scmp.eq.s32.totalorder %s9, 1
    %p94 = por %p92, %p93
    %p95 = scmp.ne.s32.totalorder %s87, %s90
    %p96 = scmp.eq.s32.totalorder %s9, 0
    %p97 = por %p95, %p96
    %p98 = scmp.ne.s32.totalorder %s87, %s90
    %p99 = scmp.eq.s32.totalorder %s14, 1
    %p100 = por %p98, %p99
    %p101 = scmp.ne.s32.totalorder %s90, %s91
    %p102 = scmp.eq.s32.totalorder %s14, 0
    %p103 = por %p101, %p102
    %p104 = scmp.ne.s32.totalorder %s90, %s91
    %p105 = scmp.eq.s32.totalorder %s15, 1
    %p106 = por %p104, %p105
    %p108 = scmp.ne.s32.totalorder %s91, %s107
    %p109 = scmp.eq.s32.totalorder %s15, 0
    %p110 = por %p108, %p109
    %p111 = scmp.le.s32.totalorder 1, %s9
    %p112 = scmp.lt.s32.totalorder %s9, 3
    %p113 = pnand %p111, %p112
    %p114 = pneg %p113
    // Predicated region
    $region9: #{bottleneck_forward.2} parent=5 // pred_check
      _
    $region10: #{bottleneck_forward.2} parent=5 // pred_check_branch
      %116 = sbr.rel (%p113) target = $region12
    $region11: #{bottleneck_forward.2} parent=5 // pred_region
      %s117 = ssub.s32 %s9, 1
      // Predicated region
      $region13: #{bottleneck_forward.2} parent=11 // pred_check
        %p118 = pneg %p56
      $region14: #{bottleneck_forward.2} parent=11 // pred_check_branch
        %120 = sbr.rel (%p118) target = $region16
      $region15: #{bottleneck_forward.2} parent=11 // pred_region
        _
      $region16: #{bottleneck_forward.2} parent=11 // pred_fallthru
        _
      // Predicated region
      $region17: #{bottleneck_forward.2} parent=11 // pred_check
        %p121 = pneg %p77
      $region18: #{bottleneck_forward.2} parent=11 // pred_check_branch
        %123 = sbr.rel (%p121) target = $region20
      $region19: #{bottleneck_forward.2} parent=11 // pred_region
        _
      $region20: #{bottleneck_forward.2} parent=11 // pred_fallthru
        _
    $region12: #{bottleneck_forward.2} parent=5 // pred_fallthru
      _
    %p124 = scmp.lt.s32.totalorder %s9, 2
    // Predicated region
    $region21: #{bottleneck_forward.2} parent=5 // pred_check
      %p125 = pneg %p124
    $region22: #{bottleneck_forward.2} parent=5 // pred_check_branch
      %127 = sbr.rel (%p125) target = $region24
    $region23: #{bottleneck_forward.2} parent=5 // pred_region
      // Predicated region
      $region25: #{bottleneck_forward.2} parent=23 // pred_check
        %p128 = pneg %p29
      $region26: #{bottleneck_forward.2} parent=23 // pred_check_branch
        %130 = sbr.rel (%p128) target = $region28
      $region27: #{bottleneck_forward.2} parent=23 // pred_region
        %s131 = smul.u32 32, %s9
        %p132 = scmp.lt.s32.totalorder %s131, 63
        %s133 = scalar_select %p132, %s131, 63
        %s134 = smul.addr %s133, 4
        %s135 = scalar_lea.vmem %s0, %s134
        %s136 = smul.u32 32, %s9
      $region28: #{bottleneck_forward.2} parent=23 // pred_fallthru
        _
    $region24: #{bottleneck_forward.2} parent=5 // pred_fallthru
      _
    %p137 = scmp.le.s32.totalorder 1, %s9
    %p138 = scmp.lt.s32.totalorder %s9, 3
    %p139 = pnand %p137, %p138
    %p140 = pneg %p139
    // Predicated region
    $region29: #{bottleneck_forward.2} parent=5 // pred_check
      _
    $region30: #{bottleneck_forward.2} parent=5 // pred_check_branch
      %142 = sbr.rel (%p139) target = $region32
    $region31: #{bottleneck_forward.2} parent=5 // pred_region
      %s143 = ssub.s32 %s9, 1
      %s144 = smul.u32 32, %s14
      %p145 = scmp.lt.s32.totalorder %s144, 63
      %s146 = scalar_select %p145, %s144, 63
      %s147 = smul.addr %s146, 4
      %s148 = scalar_lea.vmem %s0, %s147
      %p149 = pneg %p35
      %p150 = pneg %p32
      %p151 = pneg %p56
      %p152 = pneg %p53
      %p153 = pneg %p77
      %p154 = pneg %p74
      %p155 = pneg %p103
      %p156 = pneg %p100
      %s157 = smul.u32 32, %s14
      %p158 = scmp.lt.s32.totalorder %s157, 63
      %s159 = scalar_select %p158, %s157, 63
      %s160 = smul.addr %s159, 4
      %s161 = scalar_lea.vmem %s3, %s160
      %s162 = smul.u32 32, %s14
      %p163 = scmp.lt.s32.totalorder %s162, 63
      %s164 = scalar_select %p163, %s162, 63
      %s165 = smul.addr %s164, 4
      %s166 = scalar_lea.vmem %s0, %s165
      %s167 = smul.u32 32, %s14
      %s168 = smul.u32 32, %s14
      %p169 = scmp.lt.s32.totalorder %s168, 63
      %s170 = scalar_select %p169, %s168, 63
      %s171 = smul.addr %s170, 4
      %s172 = scalar_lea.vmem %s3, %s171
      %s173 = smul.u32 32, %s14
      %v175 = vld [vmem:[%s166] sm:$0xf]
      %v176 = vld [vmem:[%s166 + $0x4] sm:$0xf]
      %v177 = vld [vmem:[%s166 + $0x8] sm:$0xf]
      %v178 = vld [vmem:[%s166 + $0xc] sm:$0xf]
      %v179 = vld [vmem:[%s166 + $0x10] sm:$0xf]
      %v180 = vld [vmem:[%s166 + $0x14] sm:$0xf]
      %v181 = vld [vmem:[%s166 + $0x18] sm:$0xf]
      %v182 = vld [vmem:[%s166 + $0x1c] sm:$0xf]
      %v183 = vld [vmem:[%s166 + $0x20] sm:$0xf]
      %v184 = vld [vmem:[%s166 + $0x24] sm:$0xf]
      %v185 = vld [vmem:[%s166 + $0x28] sm:$0xf]
      %v186 = vld [vmem:[%s166 + $0x2c] sm:$0xf]
      %v187 = vld [vmem:[%s166 + $0x30] sm:$0xf]
      %v188 = vld [vmem:[%s166 + $0x34] sm:$0xf]
      %v189 = vld [vmem:[%s166 + $0x38] sm:$0xf]
      %v190 = vld [vmem:[%s166 + $0x3c] sm:$0xf]
      %v191 = vld [vmem:[%s166 + $0x40] sm:$0xf]
      %v192 = vld [vmem:[%s166 + $0x44] sm:$0xf]
      %v193 = vld [vmem:[%s166 + $0x48] sm:$0xf]
      %v194 = vld [vmem:[%s166 + $0x4c] sm:$0xf]
      %v195 = vld [vmem:[%s166 + $0x50] sm:$0xf]
      %v196 = vld [vmem:[%s166 + $0x54] sm:$0xf]
      %v197 = vld [vmem:[%s166 + $0x58] sm:$0xf]
      %v198 = vld [vmem:[%s166 + $0x5c] sm:$0xf]
      %v199 = vld [vmem:[%s166 + $0x60] sm:$0xf]
      %v200 = vld [vmem:[%s166 + $0x64] sm:$0xf]
      %v201 = vld [vmem:[%s166 + $0x68] sm:$0xf]
      %v202 = vld [vmem:[%s166 + $0x6c] sm:$0xf]
      %v203 = vld [vmem:[%s166 + $0x70] sm:$0xf]
      %v204 = vld [vmem:[%s166 + $0x74] sm:$0xf]
      %v205 = vld [vmem:[%s166 + $0x78] sm:$0xf]
      %v206 = vld [vmem:[%s166 + $0x7c] sm:$0xf]
      %v207 = vld [vmem:[%s1] sm:$0xf]
      %v208 = vld [vmem:[%s1 + $0x4] sm:$0xf]
      %v209 = vld [vmem:[%s1 + $0x8] sm:$0xf]
      %v210 = vld [vmem:[%s1 + $0xc] sm:$0xf]
      %v211 = vld [vmem:[%s1 + $0x10] sm:$0xf]
      %v212 = vld [vmem:[%s1 + $0x14] sm:$0xf]
      %v213 = vld [vmem:[%s1 + $0x18] sm:$0xf]
      %v214 = vld [vmem:[%s1 + $0x1c] sm:$0xf]
      %v215 = vld [vmem:[%s1 + $0x20] sm:$0xf]
      %v216 = vld [vmem:[%s1 + $0x24] sm:$0xf]
      %v217 = vld [vmem:[%s1 + $0x28] sm:$0xf]
      %v218 = vld [vmem:[%s1 + $0x2c] sm:$0xf]
      %v219 = vld [vmem:[%s1 + $0x30] sm:$0xf]
      %v220 = vld [vmem:[%s1 + $0x34] sm:$0xf]
      %v221 = vld [vmem:[%s1 + $0x38] sm:$0xf]
      %v222 = vld [vmem:[%s1 + $0x3c] sm:$0xf]
      %v223 = vld [vmem:[%s2] sm:$0x1]
      %v225 = vlaneseq
      %v226 = vshrl.u32 %v225, 7
      %v227 = vsub.s32 0, %v226
      %v228 = vrot.slane %v223, %v227
      %v262 = vunpack.c.l.b16 %v175
      %v263 = vunpack.c.l.b16 %v176
      %v264 = vunpack.c.l.b16 %v177
      %v265 = vunpack.c.l.b16 %v178
      %v266 = vunpack.c.l.b16 %v179
      %v267 = vunpack.c.l.b16 %v180
      %v268 = vunpack.c.l.b16 %v181
      %v269 = vunpack.c.l.b16 %v182
      %v270 = vunpack.c.l.b16 %v183
      %v271 = vunpack.c.l.b16 %v184
      %v272 = vunpack.c.l.b16 %v185
      %v273 = vunpack.c.l.b16 %v186
      %v274 = vunpack.c.l.b16 %v187
      %v275 = vunpack.c.l.b16 %v188
      %v276 = vunpack.c.l.b16 %v189
      %v277 = vunpack.c.l.b16 %v190
      %v278 = vunpack.c.l.b16 %v191
      %v279 = vunpack.c.l.b16 %v192
      %v280 = vunpack.c.l.b16 %v193
      %v281 = vunpack.c.l.b16 %v194
      %v282 = vunpack.c.l.b16 %v195
      %v283 = vunpack.c.l.b16 %v196
      %v284 = vunpack.c.l.b16 %v197
      %v285 = vunpack.c.l.b16 %v198
      %v286 = vunpack.c.l.b16 %v199
      %v287 = vunpack.c.l.b16 %v200
      %v288 = vunpack.c.l.b16 %v201
      %v289 = vunpack.c.l.b16 %v202
      %v290 = vunpack.c.l.b16 %v203
      %v291 = vunpack.c.l.b16 %v204
      %v292 = vunpack.c.l.b16 %v205
      %v293 = vunpack.c.l.b16 %v206
      %v294 = vpack.c.b16 %v263, %v262
      %v295 = vpack.c.b16 %v265, %v264
      %v296 = vpack.c.b16 %v267, %v266
      %v297 = vpack.c.b16 %v269, %v268
      %v298 = vpack.c.b16 %v271, %v270
      %v299 = vpack.c.b16 %v273, %v272
      %v300 = vpack.c.b16 %v275, %v274
      %v301 = vpack.c.b16 %v277, %v276
      %v302 = vpack.c.b16 %v279, %v278
      %v303 = vpack.c.b16 %v281, %v280
      %v304 = vpack.c.b16 %v283, %v282
      %v305 = vpack.c.b16 %v285, %v284
      %v306 = vpack.c.b16 %v287, %v286
      %v307 = vpack.c.b16 %v289, %v288
      %v308 = vpack.c.b16 %v291, %v290
      %v309 = vpack.c.b16 %v293, %v292
      %v342 = vunpack.c.l.b16 %v207
      %v343 = vunpack.c.l.b16 %v208
      %v344 = vunpack.c.l.b16 %v209
      %v345 = vunpack.c.l.b16 %v210
      %v346 = vunpack.c.l.b16 %v211
      %v347 = vunpack.c.l.b16 %v212
      %v348 = vunpack.c.l.b16 %v213
      %v349 = vunpack.c.l.b16 %v214
      %v350 = vunpack.c.l.b16 %v215
      %v351 = vunpack.c.l.b16 %v216
      %v352 = vunpack.c.l.b16 %v217
      %v353 = vunpack.c.l.b16 %v218
      %v354 = vunpack.c.l.b16 %v219
      %v355 = vunpack.c.l.b16 %v220
      %v356 = vunpack.c.l.b16 %v221
      %v357 = vunpack.c.l.b16 %v222
      %v358 = vpack.c.b16 %v343, %v342
      %v359 = vpack.c.b16 %v345, %v344
      %v360 = vpack.c.b16 %v347, %v346
      %v361 = vpack.c.b16 %v349, %v348
      %v362 = vpack.c.b16 %v351, %v350
      %v363 = vpack.c.b16 %v353, %v352
      %v364 = vpack.c.b16 %v355, %v354
      %v365 = vpack.c.b16 %v357, %v356
      %374 = vmatprep.subr.bf16.mxu0 0
      %375 = vmatpush1.bf16.msra.mxu0 %v358
      %376 = vmatprep.subr.bf16.mxu0 0
      %377 = vmatpush1.bf16.msra.mxu0 %v359
      %378 = vmatprep.subr.bf16.mxu0 0
      %379 = vmatpush1.bf16.msra.mxu0 %v360
      %380 = vmatprep.subr.bf16.mxu0 0
      %381 = vmatpush1.bf16.msra.mxu0 %v361
      %382 = vmatprep.subr.bf16.mxu0 0
      %383 = vmatpush1.bf16.msra.mxu0 %v362
      %384 = vmatprep.subr.bf16.mxu0 0
      %385 = vmatpush1.bf16.msra.mxu0 %v363
      %386 = vmatprep.subr.bf16.mxu0 0
      %387 = vmatpush1.bf16.msra.mxu0 %v364
      %388 = vmatprep.subr.bf16.mxu0 0
      %389 = vmatpush1.bf16.msra.mxu0 %v365
      %390 = vmatprep.subr.bf16.mxu0 0
      %391 = vmatpush1.bf16.msra.mxu0 0
      %392 = vmatprep.subr.bf16.mxu0 0
      %393 = vmatpush1.bf16.msra.mxu0 0
      %394 = vmatprep.subr.bf16.mxu0 0
      %395 = vmatpush1.bf16.msra.mxu0 0
      %396 = vmatprep.subr.bf16.mxu0 0
      %397 = vmatpush1.bf16.msra.mxu0 0
      %398 = vmatprep.subr.bf16.mxu0 0
      %399 = vmatpush1.bf16.msra.mxu0 0
      %400 = vmatprep.subr.bf16.mxu0 0
      %401 = vmatpush1.bf16.msra.mxu0 0
      %402 = vmatprep.subr.bf16.mxu0 0
      %403 = vmatpush1.bf16.msra.mxu0 0
      %404 = vmatprep.subr.bf16.mxu0 0
      %405 = vmatpush1.bf16.msra.mxu0 0
      %406 = vmatprep.mubr.bf16.mxu0 0
      %407 = vmatmul.mubr.bf16.gmra.mrb[0].mxu0 %v294
      %v408 = vpop.f32.mrb[0].mxu0
      %v409 = vadd.f32 %v228, %v408
      %v410 = vpop.f32.mrb[0].mxu0
      %v411 = vpop.f32.mrb[0].mxu0
      %v412 = vadd.f32 %v228, %v411
      %v413 = vpop.f32.mrb[0].mxu0
      %414 = vmatprep.mubr.bf16.mxu0 0
      %415 = vmatmul.mubr.bf16.gmra.mrb[0].mxu0 %v295
      %v416 = vpop.f32.mrb[0].mxu0
      %v417 = vadd.f32 %v228, %v416
      %v418 = vpop.f32.mrb[0].mxu0
      %v419 = vpop.f32.mrb[0].mxu0
      %v420 = vadd.f32 %v228, %v419
      %v421 = vpop.f32.mrb[0].mxu0
      %422 = vmatprep.mubr.bf16.mxu0 0
      %423 = vmatmul.mubr.bf16.gmra.mrb[0].mxu0 %v296
      %v424 = vpop.f32.mrb[0].mxu0
      %v425 = vadd.f32 %v228, %v424
      %v426 = vpop.f32.mrb[0].mxu0
      %v427 = vpop.f32.mrb[0].mxu0
      %v428 = vadd.f32 %v228, %v427
      %v429 = vpop.f32.mrb[0].mxu0
      %430 = vmatprep.mubr.bf16.mxu0 0
      %431 = vmatmul.mubr.bf16.gmra.mrb[0].mxu0 %v297
      %v432 = vpop.f32.mrb[0].mxu0
      %v433 = vadd.f32 %v228, %v432
      %v434 = vpop.f32.mrb[0].mxu0
      %v435 = vpop.f32.mrb[0].mxu0
      %v436 = vadd.f32 %v228, %v435
      %v437 = vpop.f32.mrb[0].mxu0
      %438 = vmatprep.mubr.bf16.mxu0 0
      %439 = vmatmul.mubr.bf16.gmra.mrb[0].mxu0 %v298
      %v440 = vpop.f32.mrb[0].mxu0
      %v441 = vadd.f32 %v228, %v440
      %v442 = vpop.f32.mrb[0].mxu0
      %v443 = vpop.f32.mrb[0].mxu0
      %v444 = vadd.f32 %v228, %v443
      %v445 = vpop.f32.mrb[0].mxu0
      %446 = vmatprep.mubr.bf16.mxu0 0
      %447 = vmatmul.mubr.bf16.gmra.mrb[0].mxu0 %v299
      %v448 = vpop.f32.mrb[0].mxu0
      %v449 = vadd.f32 %v228, %v448
      %v450 = vpop.f32.mrb[0].mxu0
      %v451 = vpop.f32.mrb[0].mxu0
      %v452 = vadd.f32 %v228, %v451
      %v453 = vpop.f32.mrb[0].mxu0
      %454 = vmatprep.mubr.bf16.mxu0 0
      %455 = vmatmul.mubr.bf16.gmra.mrb[0].mxu0 %v300
      %v456 = vpop.f32.mrb[0].mxu0
      %v457 = vadd.f32 %v228, %v456
      %v458 = vpop.f32.mrb[0].mxu0
      %v459 = vpop.f32.mrb[0].mxu0
      %v460 = vadd.f32 %v228, %v459
      %v461 = vpop.f32.mrb[0].mxu0
      %462 = vmatprep.mubr.bf16.mxu0 0
      %463 = vmatmul.mubr.bf16.gmra.mrb[0].mxu0 %v301
      %v464 = vpop.f32.mrb[0].mxu0
      %v465 = vadd.f32 %v228, %v464
      %v466 = vpop.f32.mrb[0].mxu0
      %v467 = vpop.f32.mrb[0].mxu0
      %v468 = vadd.f32 %v228, %v467
      %v469 = vpop.f32.mrb[0].mxu0
      %470 = vmatprep.mubr.bf16.mxu0 0
      %471 = vmatmul.mubr.bf16.gmra.mrb[0].mxu0 %v302
      %v472 = vpop.f32.mrb[0].mxu0
      %v473 = vadd.f32 %v228, %v472
      %v474 = vpop.f32.mrb[0].mxu0
      %v475 = vpop.f32.mrb[0].mxu0
      %v476 = vadd.f32 %v228, %v475
      %v477 = vpop.f32.mrb[0].mxu0
      %478 = vmatprep.mubr.bf16.mxu0 0
      %479 = vmatmul.mubr.bf16.gmra.mrb[0].mxu0 %v303
      %v480 = vpop.f32.mrb[0].mxu0
      %v481 = vadd.f32 %v228, %v480
      %v482 = vpop.f32.mrb[0].mxu0
      %v483 = vpop.f32.mrb[0].mxu0
      %v484 = vadd.f32 %v228, %v483
      %v485 = vpop.f32.mrb[0].mxu0
      %486 = vmatprep.mubr.bf16.mxu0 0
      %487 = vmatmul.mubr.bf16.gmra.mrb[0].mxu0 %v304
      %v488 = vpop.f32.mrb[0].mxu0
      %v489 = vadd.f32 %v228, %v488
      %v490 = vpop.f32.mrb[0].mxu0
      %v491 = vpop.f32.mrb[0].mxu0
      %v492 = vadd.f32 %v228, %v491
      %v493 = vpop.f32.mrb[0].mxu0
      %494 = vmatprep.mubr.bf16.mxu0 0
      %495 = vmatmul.mubr.bf16.gmra.mrb[0].mxu0 %v305
      %v496 = vpop.f32.mrb[0].mxu0
      %v497 = vadd.f32 %v228, %v496
      %v498 = vpop.f32.mrb[0].mxu0
      %v499 = vpop.f32.mrb[0].mxu0
      %v500 = vadd.f32 %v228, %v499
      %v501 = vpop.f32.mrb[0].mxu0
      %502 = vmatprep.mubr.bf16.mxu0 0
      %503 = vmatmul.mubr.bf16.gmra.mrb[0].mxu0 %v306
      %v504 = vpop.f32.mrb[0].mxu0
      %v505 = vadd.f32 %v228, %v504
      %v506 = vpop.f32.mrb[0].mxu0
      %v507 = vpop.f32.mrb[0].mxu0
      %v508 = vadd.f32 %v228, %v507
      %v509 = vpop.f32.mrb[0].mxu0
      %510 = vmatprep.mubr.bf16.mxu0 0
      %511 = vmatmul.mubr.bf16.gmra.mrb[0].mxu0 %v307
      %v512 = vpop.f32.mrb[0].mxu0
      %v513 = vadd.f32 %v228, %v512
      %v514 = vpop.f32.mrb[0].mxu0
      %v515 = vpop.f32.mrb[0].mxu0
      %v516 = vadd.f32 %v228, %v515
      %v517 = vpop.f32.mrb[0].mxu0
      %518 = vmatprep.mubr.bf16.mxu0 0
      %519 = vmatmul.mubr.bf16.gmra.mrb[0].mxu0 %v308
      %v520 = vpop.f32.mrb[0].mxu0
      %v521 = vadd.f32 %v228, %v520
      %v522 = vpop.f32.mrb[0].mxu0
      %v523 = vpop.f32.mrb[0].mxu0
      %v524 = vadd.f32 %v228, %v523
      %v525 = vpop.f32.mrb[0].mxu0
      %526 = vmatprep.mubr.bf16.mxu0 0
      %527 = vmatmul.mubr.bf16.gmra.mrb[0].mxu0 %v309
      %v528 = vpop.f32.mrb[0].mxu0
      %v529 = vadd.f32 %v228, %v528
      %v530 = vpop.f32.mrb[0].mxu0
      %v531 = vpop.f32.mrb[0].mxu0
      %v532 = vadd.f32 %v228, %v531
      %v533 = vpop.f32.mrb[0].mxu0
      %534 = vdwg.mxu0
      %v535 = vmax.f32 %v409, 0.0
      %v536 = vmax.f32 %v412, 0.0
      %v537 = vmax.f32 %v417, 0.0
      %v538 = vmax.f32 %v420, 0.0
      %v539 = vmax.f32 %v425, 0.0
      %v540 = vmax.f32 %v428, 0.0
      %v541 = vmax.f32 %v433, 0.0
      %v542 = vmax.f32 %v436, 0.0
      %v543 = vmax.f32 %v441, 0.0
      %v544 = vmax.f32 %v444, 0.0
      %v545 = vmax.f32 %v449, 0.0
      %v546 = vmax.f32 %v452, 0.0
      %v547 = vmax.f32 %v457, 0.0
      %v548 = vmax.f32 %v460, 0.0
      %v549 = vmax.f32 %v465, 0.0
      %v550 = vmax.f32 %v468, 0.0
      %v551 = vmax.f32 %v473, 0.0
      %v552 = vmax.f32 %v476, 0.0
      %v553 = vmax.f32 %v481, 0.0
      %v554 = vmax.f32 %v484, 0.0
      %v555 = vmax.f32 %v489, 0.0
      %v556 = vmax.f32 %v492, 0.0
      %v557 = vmax.f32 %v497, 0.0
      %v558 = vmax.f32 %v500, 0.0
      %v559 = vmax.f32 %v505, 0.0
      %v560 = vmax.f32 %v508, 0.0
      %v561 = vmax.f32 %v513, 0.0
      %v562 = vmax.f32 %v516, 0.0
      %v563 = vmax.f32 %v521, 0.0
      %v564 = vmax.f32 %v524, 0.0
      %v565 = vmax.f32 %v529, 0.0
      %v566 = vmax.f32 %v532, 0.0
      %v567 = vpack.c.bf16 %v536, %v535
      %v568 = vpack.c.bf16 %v538, %v537
      %v569 = vpack.c.bf16 %v540, %v539
      %v570 = vpack.c.bf16 %v542, %v541
      %v571 = vpack.c.bf16 %v544, %v543
      %v572 = vpack.c.bf16 %v546, %v545
      %v573 = vpack.c.bf16 %v548, %v547
      %v574 = vpack.c.bf16 %v550, %v549
      %v575 = vpack.c.bf16 %v552, %v551
      %v576 = vpack.c.bf16 %v554, %v553
      %v577 = vpack.c.bf16 %v556, %v555
      %v578 = vpack.c.bf16 %v558, %v557
      %v579 = vpack.c.bf16 %v560, %v559
      %v580 = vpack.c.bf16 %v562, %v561
      %v581 = vpack.c.bf16 %v564, %v563
      %v582 = vpack.c.bf16 %v566, %v565
      %v599 = vunpack.c.l.b16 %v567
      %v600 = vunpack.c.h.b16 %v567
      %v601 = vunpack.c.l.b16 %v568
      %v602 = vunpack.c.h.b16 %v568
      %v603 = vunpack.c.l.b16 %v569
      %v604 = vunpack.c.h.b16 %v569
      %v605 = vunpack.c.l.b16 %v570
      %v606 = vunpack.c.h.b16 %v570
      %v607 = vunpack.c.l.b16 %v571
      %v608 = vunpack.c.h.b16 %v571
      %v609 = vunpack.c.l.b16 %v572
      %v610 = vunpack.c.h.b16 %v572
      %v611 = vunpack.c.l.b16 %v573
      %v612 = vunpack.c.h.b16 %v573
      %v613 = vunpack.c.l.b16 %v574
      %v614 = vunpack.c.h.b16 %v574
      %v615 = vunpack.c.l.b16 %v575
      %v616 = vunpack.c.h.b16 %v575
      %v617 = vunpack.c.l.b16 %v576
      %v618 = vunpack.c.h.b16 %v576
      %v619 = vunpack.c.l.b16 %v577
      %v620 = vunpack.c.h.b16 %v577
      %v621 = vunpack.c.l.b16 %v578
      %v622 = vunpack.c.h.b16 %v578
      %v623 = vunpack.c.l.b16 %v579
      %v624 = vunpack.c.h.b16 %v579
      %v625 = vunpack.c.l.b16 %v580
      %v626 = vunpack.c.h.b16 %v580
      %v627 = vunpack.c.l.b16 %v581
      %v628 = vunpack.c.h.b16 %v581
      %v629 = vunpack.c.l.b16 %v582
      %v630 = vunpack.c.h.b16 %v582
      %v631 = vpack.c.b16 %v599, %v599
      %v632 = vpack.c.b16 %v600, %v600
      %v633 = vpack.c.b16 %v601, %v601
      %v634 = vpack.c.b16 %v602, %v602
      %v635 = vpack.c.b16 %v603, %v603
      %v636 = vpack.c.b16 %v604, %v604
      %v637 = vpack.c.b16 %v605, %v605
      %v638 = vpack.c.b16 %v606, %v606
      %v639 = vpack.c.b16 %v607, %v607
      %v640 = vpack.c.b16 %v608, %v608
      %v641 = vpack.c.b16 %v609, %v609
      %v642 = vpack.c.b16 %v610, %v610
      %v643 = vpack.c.b16 %v611, %v611
      %v644 = vpack.c.b16 %v612, %v612
      %v645 = vpack.c.b16 %v613, %v613
      %v646 = vpack.c.b16 %v614, %v614
      %v647 = vpack.c.b16 %v615, %v615
      %v648 = vpack.c.b16 %v616, %v616
      %v649 = vpack.c.b16 %v617, %v617
      %v650 = vpack.c.b16 %v618, %v618
      %v651 = vpack.c.b16 %v619, %v619
      %v652 = vpack.c.b16 %v620, %v620
      %v653 = vpack.c.b16 %v621, %v621
      %v654 = vpack.c.b16 %v622, %v622
      %v655 = vpack.c.b16 %v623, %v623
      %v656 = vpack.c.b16 %v624, %v624
      %v657 = vpack.c.b16 %v625, %v625
      %v658 = vpack.c.b16 %v626, %v626
      %v659 = vpack.c.b16 %v627, %v627
      %v660 = vpack.c.b16 %v628, %v628
      %v661 = vpack.c.b16 %v629, %v629
      %v662 = vpack.c.b16 %v630, %v630
      %vm695 = vcmask 257024
      %696 = vst.msk [vmem:[%s172] sm:$0xf] %vm695, %v631
      %697 = vst.msk [vmem:[%s172 + $0x4] sm:$0xf] %vm695, %v632
      %698 = vst.msk [vmem:[%s172 + $0x8] sm:$0xf] %vm695, %v633
      %699 = vst.msk [vmem:[%s172 + $0xc] sm:$0xf] %vm695, %v634
      %700 = vst.msk [vmem:[%s172 + $0x10] sm:$0xf] %vm695, %v635
      %701 = vst.msk [vmem:[%s172 + $0x14] sm:$0xf] %vm695, %v636
      %702 = vst.msk [vmem:[%s172 + $0x18] sm:$0xf] %vm695, %v637
      %703 = vst.msk [vmem:[%s172 + $0x1c] sm:$0xf] %vm695, %v638
      %704 = vst.msk [vmem:[%s172 + $0x20] sm:$0xf] %vm695, %v639
      %705 = vst.msk [vmem:[%s172 + $0x24] sm:$0xf] %vm695, %v640
      %706 = vst.msk [vmem:[%s172 + $0x28] sm:$0xf] %vm695, %v641
      %707 = vst.msk [vmem:[%s172 + $0x2c] sm:$0xf] %vm695, %v642
      %708 = vst.msk [vmem:[%s172 + $0x30] sm:$0xf] %vm695, %v643
      %709 = vst.msk [vmem:[%s172 + $0x34] sm:$0xf] %vm695, %v644
      %710 = vst.msk [vmem:[%s172 + $0x38] sm:$0xf] %vm695, %v645
      %711 = vst.msk [vmem:[%s172 + $0x3c] sm:$0xf] %vm695, %v646
      %712 = vst.msk [vmem:[%s172 + $0x40] sm:$0xf] %vm695, %v647
      %713 = vst.msk [vmem:[%s172 + $0x44] sm:$0xf] %vm695, %v648
      %714 = vst.msk [vmem:[%s172 + $0x48] sm:$0xf] %vm695, %v649
      %715 = vst.msk [vmem:[%s172 + $0x4c] sm:$0xf] %vm695, %v650
      %716 = vst.msk [vmem:[%s172 + $0x50] sm:$0xf] %vm695, %v651
      %717 = vst.msk [vmem:[%s172 + $0x54] sm:$0xf] %vm695, %v652
      %718 = vst.msk [vmem:[%s172 + $0x58] sm:$0xf] %vm695, %v653
      %719 = vst.msk [vmem:[%s172 + $0x5c] sm:$0xf] %vm695, %v654
      %720 = vst.msk [vmem:[%s172 + $0x60] sm:$0xf] %vm695, %v655
      %721 = vst.msk [vmem:[%s172 + $0x64] sm:$0xf] %vm695, %v656
      %722 = vst.msk [vmem:[%s172 + $0x68] sm:$0xf] %vm695, %v657
      %723 = vst.msk [vmem:[%s172 + $0x6c] sm:$0xf] %vm695, %v658
      %724 = vst.msk [vmem:[%s172 + $0x70] sm:$0xf] %vm695, %v659
      %725 = vst.msk [vmem:[%s172 + $0x74] sm:$0xf] %vm695, %v660
      %726 = vst.msk [vmem:[%s172 + $0x78] sm:$0xf] %vm695, %v661
      %727 = vst.msk [vmem:[%s172 + $0x7c] sm:$0xf] %vm695, %v662
      %s728 = smul.u32 32, %s14
      %p729 = scmp.lt.s32.totalorder %s728, 63
      %s730 = scalar_select %p729, %s728, 63
      %s731 = smul.addr %s730, 4
      %s732 = scalar_lea.vmem %s3, %s731
      // Predicated region
      $region33: #{bottleneck_forward.2} parent=31 // pred_check
        %p733 = pneg %p100
      $region34: #{bottleneck_forward.2} parent=31 // pred_check_branch
        %735 = sbr.rel (%p733) target = $region36
      $region35: #{bottleneck_forward.2} parent=31 // pred_region
        %s736 = smul.u32 32, %s14
      $region36: #{bottleneck_forward.2} parent=31 // pred_fallthru
        _
    $region32: #{bottleneck_forward.2} parent=5 // pred_fallthru
      _
    %p737 = scmp.le.s32.totalorder 2, %s9
    // Predicated region
    $region37: #{bottleneck_forward.2} parent=5 // pred_check
      %p738 = pneg %p737
    $region38: #{bottleneck_forward.2} parent=5 // pred_check_branch
      %740 = sbr.rel (%p738) target = $region40
    $region39: #{bottleneck_forward.2} parent=5 // pred_region
      %s741 = ssub.s32 %s9, 2
      // Predicated region
      $region41: #{bottleneck_forward.2} parent=39 // pred_check
        %p742 = pneg %p106
      $region42: #{bottleneck_forward.2} parent=39 // pred_check_branch
        %744 = sbr.rel (%p742) target = $region44
      $region43: #{bottleneck_forward.2} parent=39 // pred_region
        %s745 = smul.u32 32, %s15
        %p746 = scmp.lt.s32.totalorder %s745, 63
        %s747 = scalar_select %p746, %s745, 63
        %s748 = smul.addr %s747, 4
        %s749 = scalar_lea.vmem %s3, %s748
      $region44: #{bottleneck_forward.2} parent=39 // pred_fallthru
        _
    $region40: #{bottleneck_forward.2} parent=5 // pred_fallthru
      _
  $region6: #{bottleneck_forward.2} parent=0 // loop_footer
    %s13 = sadd.s32 1, %s9
  $region7: #{bottleneck_forward.2} parent=0 // loop_footer_branch
    %8 = sbr.rel target = $region3
  $region8: #{bottleneck_forward.2} parent=0 // loop_exit
    _

// kernel: bottleneck_forward.3
$region0: #{bottleneck_forward.3}
  #allocation0 [shape = 'u32[]', space=smem, size = 0x4, offset = 0x4, fixed_abs, tag = 'smem constant byte address 0x4 - core index']
  #allocation1 [shape = 'u32[144,128]{1,0:T(1,128)}', space=vmem, size = 0x12000, scoped, tag = 'internal scratch']
  %s0 = inlined_call_operand.vmem [shape: bf16[512,288], index: 0, kind: input, shape index: {}]
  %s1 = inlined_call_operand.vmem [shape: f32[512,128], index: 1, kind: input, shape index: {}]
  %s2 = inlined_call_operand.vmem [shape: bf16[288,32], index: 2, kind: input, shape index: {}]
  %s3 = inlined_call_operand.vmem [shape: f32[1,32], index: 3, kind: input, shape index: {}]
  %s4 = inlined_call_operand.vmem [shape: bf16[32,128], index: 4, kind: input, shape index: {}]
  %s5 = inlined_call_operand.vmem [shape: f32[1,128], index: 5, kind: input, shape index: {}]
  %s6 = inlined_call_operand.hbm [shape: f32[512,128], index: 6, kind: output, shape index: {}]
  %s7 = sld [smem:[#allocation0]]
  $region57: #{bottleneck_forward.3} parent=0
    _
  %s9 = ssub.s32 1, %s7
  %s10 = scalar_select 0, %s9, %s7
  $region1: #{bottleneck_forward.3} parent=0
    #allocation2 [shape = 'u8[262144]{0}', space=vmem, size = 0x40000, scoped, tag = 'output window, operand 0']
    #allocation3 [shape = 's32[2]{0}', space=sflag, size = 0x8, scoped, tag = 'scoped memory for bottleneck_forward.3']
    %11 = vsyncpa [#allocation3], 0
    %s12 = scalar_lea.sflag [#allocation3], 1
    %13 = vsyncpa %s12, 0
    loop: start=0, step=1, limit=4
    $region2: #{bottleneck_forward.3} parent=1 // loop_pre_header
      _
    $region3: #{bottleneck_forward.3} parent=1 // loop_header
      %s15 = sphi 0, %s19
      %p16 = scmp.ge.s32.totalorder %s15, 4
      %s25 = sphi 0, %s27
      %s28 = sphi 0, %s25
      %s29 = sphi 0, %s28
      %s45 = sphi 0, %s29
      %s51 = sphi 0, %s53
      %s54 = sphi 0, %s51
      %s55 = sphi 0, %s54
      %s71 = sphi 0, %s55
      %s75 = sphi 0, %s75
      %s77 = sphi 0, %s75
      %s78 = sphi 0, %s77
      %s92 = sphi 0, %s78
      %s96 = sphi 0, %s96
      %s98 = sphi 0, %s96
      %s99 = sphi 0, %s98
      %s113 = sphi 0, %s99
      %s117 = sphi 0, %s117
      %s119 = sphi 0, %s117
      %s120 = sphi 0, %s119
      %s134 = sphi 0, %s120
      %s138 = sphi 0, %s138
      %s140 = sphi 0, %s138
      %s141 = sphi 0, %s140
      %s155 = sphi 0, %s141
      %s161 = sphi 0, %s163
      %s164 = sphi 0, %s161
      %s165 = sphi 0, %s164
      %s181 = sphi 0, %s165
    $region4: #{bottleneck_forward.3} parent=1 // loop_header_branch
      %18 = sbr.rel (%p16) target = $region8
    $region5: #{bottleneck_forward.3} parent=1 // loop_body
      %s20 = ssub.s32 %s15, 1
      %s21 = ssub.s32 %s15, 2
      %s22 = sadd.s32 %s15, 1
      %s23 = ssub.s32 %s15, %s22
      %p24 = scmp.eq.s32.totalorder %s23, 0
      %s26 = sadd.s32 %s25, 1
      %s27 = scalar_select %p24, %s25, %s26
      %p30 = pneg %p24
      %p31 = scmp.eq.s32.totalorder %s15, 1
      %p32 = por %p30, %p31
      %p33 = scmp.ne.s32.totalorder %s25, %s28
      %p34 = scmp.eq.s32.totalorder %s15, 0
      %p35 = por %p33, %p34
      %p36 = scmp.ne.s32.totalorder %s25, %s28
      %p37 = scmp.eq.s32.totalorder %s20, 1
      %p38 = por %p36, %p37
      %p39 = scmp.ne.s32.totalorder %s28, %s29
      %p40 = scmp.eq.s32.totalorder %s20, 0
      %p41 = por %p39, %p40
      %p42 = scmp.ne.s32.totalorder %s28, %s29
      %p43 = scmp.eq.s32.totalorder %s21, 1
      %p44 = por %p42, %p43
      %p46 = scmp.ne.s32.totalorder %s29, %s45
      %p47 = scmp.eq.s32.totalorder %s21, 0
      %p48 = por %p46, %p47
      %s49 = ssub.s32 %s15, %s22
      %p50 = scmp.eq.s32.totalorder %s49, 0
      %s52 = sadd.s32 %s51, 1
      %s53 = scalar_select %p50, %s51, %s52
      %p56 = pneg %p50
      %p57 = scmp.eq.s32.totalorder %s15, 1
      %p58 = por %p56, %p57
      %p59 = scmp.ne.s32.totalorder %s51, %s54
      %p60 = scmp.eq.s32.totalorder %s15, 0
      %p61 = por %p59, %p60
      %p62 = scmp.ne.s32.totalorder %s51, %s54
      %p63 = scmp.eq.s32.totalorder %s20, 1
      %p64 = por %p62, %p63
      %p65 = scmp.ne.s32.totalorder %s54, %s55
      %p66 = scmp.eq.s32.totalorder %s20, 0
      %p67 = por %p65, %p66
      %p68 = scmp.ne.s32.totalorder %s54, %s55
      %p69 = scmp.eq.s32.totalorder %s21, 1
      %p70 = por %p68, %p69
      %p72 = scmp.ne.s32.totalorder %s55, %s71
      %p73 = scmp.eq.s32.totalorder %s21, 0
      %p74 = por %p72, %p73
      %s76 = sadd.s32 %s75, 1
      %p79 = scmp.eq.s32.totalorder %s15, 1
      %p80 = scmp.ne.s32.totalorder %s75, %s77
      %p81 = scmp.eq.s32.totalorder %s15, 0
      %p82 = por %p80, %p81
      %p83 = scmp.ne.s32.totalorder %s75, %s77
      %p84 = scmp.eq.s32.totalorder %s20, 1
      %p85 = por %p83, %p84
      %p86 = scmp.ne.s32.totalorder %s77, %s78
      %p87 = scmp.eq.s32.totalorder %s20, 0
      %p88 = por %p86, %p87
      %p89 = scmp.ne.s32.totalorder %s77, %s78
      %p90 = scmp.eq.s32.totalorder %s21, 1
      %p91 = por %p89, %p90
      %p93 = scmp.ne.s32.totalorder %s78, %s92
      %p94 = scmp.eq.s32.totalorder %s21, 0
      %p95 = por %p93, %p94
      %s97 = sadd.s32 %s96, 1
      %p100 = scmp.eq.s32.totalorder %s15, 1
      %p101 = scmp.ne.s32.totalorder %s96, %s98
      %p102 = scmp.eq.s32.totalorder %s15, 0
      %p103 = por %p101, %p102
      %p104 = scmp.ne.s32.totalorder %s96, %s98
      %p105 = scmp.eq.s32.totalorder %s20, 1
      %p106 = por %p104, %p105
      %p107 = scmp.ne.s32.totalorder %s98, %s99
      %p108 = scmp.eq.s32.totalorder %s20, 0
      %p109 = por %p107, %p108
      %p110 = scmp.ne.s32.totalorder %s98, %s99
      %p111 = scmp.eq.s32.totalorder %s21, 1
      %p112 = por %p110, %p111
      %p114 = scmp.ne.s32.totalorder %s99, %s113
      %p115 = scmp.eq.s32.totalorder %s21, 0
      %p116 = por %p114, %p115
      %s118 = sadd.s32 %s117, 1
      %p121 = scmp.eq.s32.totalorder %s15, 1
      %p122 = scmp.ne.s32.totalorder %s117, %s119
      %p123 = scmp.eq.s32.totalorder %s15, 0
      %p124 = por %p122, %p123
      %p125 = scmp.ne.s32.totalorder %s117, %s119
      %p126 = scmp.eq.s32.totalorder %s20, 1
      %p127 = por %p125, %p126
      %p128 = scmp.ne.s32.totalorder %s119, %s120
      %p129 = scmp.eq.s32.totalorder %s20, 0
      %p130 = por %p128, %p129
      %p131 = scmp.ne.s32.totalorder %s119, %s120
      %p132 = scmp.eq.s32.totalorder %s21, 1
      %p133 = por %p131, %p132
      %p135 = scmp.ne.s32.totalorder %s120, %s134
      %p136 = scmp.eq.s32.totalorder %s21, 0
      %p137 = por %p135, %p136
      %s139 = sadd.s32 %s138, 1
      %p142 = scmp.eq.s32.totalorder %s15, 1
      %p143 = scmp.ne.s32.totalorder %s138, %s140
      %p144 = scmp.eq.s32.totalorder %s15, 0
      %p145 = por %p143, %p144
      %p146 = scmp.ne.s32.totalorder %s138, %s140
      %p147 = scmp.eq.s32.totalorder %s20, 1
      %p148 = por %p146, %p147
      %p149 = scmp.ne.s32.totalorder %s140, %s141
      %p150 = scmp.eq.s32.totalorder %s20, 0
      %p151 = por %p149, %p150
      %p152 = scmp.ne.s32.totalorder %s140, %s141
      %p153 = scmp.eq.s32.totalorder %s21, 1
      %p154 = por %p152, %p153
      %p156 = scmp.ne.s32.totalorder %s141, %s155
      %p157 = scmp.eq.s32.totalorder %s21, 0
      %p158 = por %p156, %p157
      %s159 = ssub.s32 %s15, %s22
      %p160 = scmp.eq.s32.totalorder %s159, 0
      %s162 = sadd.s32 %s161, 1
      %s163 = scalar_select %p160, %s161, %s162
      %p166 = pneg %p160
      %p167 = scmp.eq.s32.totalorder %s15, 1
      %p168 = por %p166, %p167
      %p169 = scmp.ne.s32.totalorder %s161, %s164
      %p170 = scmp.eq.s32.totalorder %s15, 0
      %p171 = por %p169, %p170
      %p172 = scmp.ne.s32.totalorder %s161, %s164
      %p173 = scmp.eq.s32.totalorder %s20, 1
      %p174 = por %p172, %p173
      %p175 = scmp.ne.s32.totalorder %s164, %s165
      %p176 = scmp.eq.s32.totalorder %s20, 0
      %p177 = por %p175, %p176
      %p178 = scmp.ne.s32.totalorder %s164, %s165
      %p179 = scmp.eq.s32.totalorder %s21, 1
      %p180 = por %p178, %p179
      %p182 = scmp.ne.s32.totalorder %s165, %s181
      %p183 = scmp.eq.s32.totalorder %s21, 0
      %p184 = por %p182, %p183
      %p185 = scmp.le.s32.totalorder 1, %s15
      %p186 = scmp.lt.s32.totalorder %s15, 3
      %p187 = pnand %p185, %p186
      %p188 = pneg %p187
      // Predicated region
      $region9: #{bottleneck_forward.3} parent=5 // pred_check
        _
      $region10: #{bottleneck_forward.3} parent=5 // pred_check_branch
        %190 = sbr.rel (%p187) target = $region12
      $region11: #{bottleneck_forward.3} parent=5 // pred_region
        %s191 = ssub.s32 %s15, 1
        // Predicated region
        $region13: #{bottleneck_forward.3} parent=11 // pred_check
          %p192 = pneg %p88
        $region14: #{bottleneck_forward.3} parent=11 // pred_check_branch
          %194 = sbr.rel (%p192) target = $region16
        $region15: #{bottleneck_forward.3} parent=11 // pred_region
          _
        $region16: #{bottleneck_forward.3} parent=11 // pred_fallthru
          _
        // Predicated region
        $region17: #{bottleneck_forward.3} parent=11 // pred_check
          %p195 = pneg %p109
        $region18: #{bottleneck_forward.3} parent=11 // pred_check_branch
          %197 = sbr.rel (%p195) target = $region20
        $region19: #{bottleneck_forward.3} parent=11 // pred_region
          _
        $region20: #{bottleneck_forward.3} parent=11 // pred_fallthru
          _
        // Predicated region
        $region21: #{bottleneck_forward.3} parent=11 // pred_check
          %p198 = pneg %p130
        $region22: #{bottleneck_forward.3} parent=11 // pred_check_branch
          %200 = sbr.rel (%p198) target = $region24
        $region23: #{bottleneck_forward.3} parent=11 // pred_region
          _
        $region24: #{bottleneck_forward.3} parent=11 // pred_fallthru
          _
        // Predicated region
        $region25: #{bottleneck_forward.3} parent=11 // pred_check
          %p201 = pneg %p151
        $region26: #{bottleneck_forward.3} parent=11 // pred_check_branch
          %203 = sbr.rel (%p201) target = $region28
        $region27: #{bottleneck_forward.3} parent=11 // pred_region
          _
        $region28: #{bottleneck_forward.3} parent=11 // pred_fallthru
          _
      $region12: #{bottleneck_forward.3} parent=5 // pred_fallthru
        _
      %p204 = scmp.lt.s32.totalorder %s15, 2
      // Predicated region
      $region29: #{bottleneck_forward.3} parent=5 // pred_check
        %p205 = pneg %p204
      $region30: #{bottleneck_forward.3} parent=5 // pred_check_branch
        %207 = sbr.rel (%p205) target = $region32
      $region31: #{bottleneck_forward.3} parent=5 // pred_region
        // Predicated region
        $region33: #{bottleneck_forward.3} parent=31 // pred_check
          %p208 = pneg %p35
        $region34: #{bottleneck_forward.3} parent=31 // pred_check_branch
          %210 = sbr.rel (%p208) target = $region36
        $region35: #{bottleneck_forward.3} parent=31 // pred_region
          %s211 = smul.u32 32, %s15
          %p212 = scmp.lt.s32.totalorder %s211, 63
          %s213 = scalar_select %p212, %s211, 63
          %s214 = smul.addr %s213, 3
          %s215 = smul.addr %s214, 4
          %s216 = scalar_lea.vmem %s0, %s215
          %s217 = smul.u32 32, %s15
        $region36: #{bottleneck_forward.3} parent=31 // pred_fallthru
          _
        // Predicated region
        $region37: #{bottleneck_forward.3} parent=31 // pred_check
          %p218 = pneg %p61
        $region38: #{bottleneck_forward.3} parent=31 // pred_check_branch
          %220 = sbr.rel (%p218) target = $region40
        $region39: #{bottleneck_forward.3} parent=31 // pred_region
          %s221 = smul.u32 32, %s15
          %p222 = scmp.lt.s32.totalorder %s221, 63
          %s223 = scalar_select %p222, %s221, 63
          %s224 = smul.addr %s223, 8
          %s225 = scalar_lea.vmem %s1, %s224
          %s226 = smul.u32 32, %s15
        $region40: #{bottleneck_forward.3} parent=31 // pred_fallthru
          _
      $region32: #{bottleneck_forward.3} parent=5 // pred_fallthru
        _
      %p227 = scmp.le.s32.totalorder 1, %s15
      %p228 = scmp.lt.s32.totalorder %s15, 3
      %p229 = pnand %p227, %p228
      %p230 = pneg %p229
      // Predicated region
      $region41: #{bottleneck_forward.3} parent=5 // pred_check
        _
      $region42: #{bottleneck_forward.3} parent=5 // pred_check_branch
        %232 = sbr.rel (%p229) target = $region44
      $region43: #{bottleneck_forward.3} parent=5 // pred_region
        %s233 = ssub.s32 %s15, 1
        %s234 = smul.u32 32, %s20
        %p235 = scmp.lt.s32.totalorder %s234, 63
        %s236 = scalar_select %p235, %s234, 63
        %s237 = smul.addr %s236, 3
        %s238 = smul.addr %s237, 4
        %s239 = scalar_lea.vmem %s0, %s238
        %p240 = pneg %p41
        %p241 = pneg %p38
        %s242 = smul.u32 32, %s20
        %p243 = scmp.lt.s32.totalorder %s242, 63
        %s244 = scalar_select %p243, %s242, 63
        %s245 = smul.addr %s244, 8
        %s246 = scalar_lea.vmem %s1, %s245
        %p247 = pneg %p67
        %p248 = pneg %p64
        %p249 = pneg %p88
        %p250 = pneg %p85
        %p251 = pneg %p109
        %p252 = pneg %p106
        %p253 = pneg %p130
        %p254 = pneg %p127
        %p255 = pneg %p151
        %p256 = pneg %p148
        %p257 = pneg %p177
        %p258 = pneg %p174
        %s259 = sand.u32 %s164, 1
        %s260 = scalar_lea.sflag [#allocation3], %s259
        %s261 = sand.u32 %s164, 1
        %s262 = smul.addr %s261, 256
        %s263 = scalar_lea.vmem [#allocation2], %s262
        %s264 = smul.u32 32, %s20
        %p265 = scmp.lt.s32.totalorder %s264, 63
        %s266 = scalar_select %p265, %s264, 63
        %s267 = smul.addr %s266, 3
        %s268 = smul.addr %s267, 4
        %s269 = scalar_lea.vmem %s0, %s268
        %s270 = smul.u32 32, %s20
        %s271 = smul.u32 32, %s20
        %p272 = scmp.lt.s32.totalorder %s271, 63
        %s273 = scalar_select %p272, %s271, 63
        %s274 = smul.addr %s273, 8
        %s275 = scalar_lea.vmem %s1, %s274
        %s276 = smul.u32 32, %s20
        %s277 = smul.u32 32, %s20
        %v279 = vld [vmem:[%s269] sm:$0xff]
        %v280 = vld [vmem:[%s269 + $0x8] sm:$0xf]
        %v281 = vld [vmem:[%s269 + $0xc] sm:$0xff]
        %v282 = vld [vmem:[%s269 + $0x14] sm:$0xf]
        %v283 = vld [vmem:[%s269 + $0x18] sm:$0xff]
        %v284 = vld [vmem:[%s269 + $0x20] sm:$0xf]
        %v285 = vld [vmem:[%s269 + $0x24] sm:$0xff]
        %v286 = vld [vmem:[%s269 + $0x2c] sm:$0xf]
        %v287 = vld [vmem:[%s269 + $0x30] sm:$0xff]
        %v288 = vld [vmem:[%s269 + $0x38] sm:$0xf]
        %v289 = vld [vmem:[%s269 + $0x3c] sm:$0xff]
        %v290 = vld [vmem:[%s269 + $0x44] sm:$0xf]
        %v291 = vld [vmem:[%s269 + $0x48] sm:$0xff]
        %v292 = vld [vmem:[%s269 + $0x50] sm:$0xf]
        %v293 = vld [vmem:[%s269 + $0x54] sm:$0xff]
        %v294 = vld [vmem:[%s269 + $0x5c] sm:$0xf]
        %v295 = vld [vmem:[%s269 + $0x60] sm:$0xff]
        %v296 = vld [vmem:[%s269 + $0x68] sm:$0xf]
        %v297 = vld [vmem:[%s269 + $0x6c] sm:$0xff]
        %v298 = vld [vmem:[%s269 + $0x74] sm:$0xf]
        %v299 = vld [vmem:[%s269 + $0x78] sm:$0xff]
        %v300 = vld [vmem:[%s269 + $0x80] sm:$0xf]
        %v301 = vld [vmem:[%s269 + $0x84] sm:$0xff]
        %v302 = vld [vmem:[%s269 + $0x8c] sm:$0xf]
        %v303 = vld [vmem:[%s269 + $0x90] sm:$0xff]
        %v304 = vld [vmem:[%s269 + $0x98] sm:$0xf]
        %v305 = vld [vmem:[%s269 + $0x9c] sm:$0xff]
        %v306 = vld [vmem:[%s269 + $0xa4] sm:$0xf]
        %v307 = vld [vmem:[%s269 + $0xa8] sm:$0xff]
        %v308 = vld [vmem:[%s269 + $0xb0] sm:$0xf]
        %v309 = vld [vmem:[%s269 + $0xb4] sm:$0xff]
        %v310 = vld [vmem:[%s269 + $0xbc] sm:$0xf]
        %v311 = vld [vmem:[%s269 + $0xc0] sm:$0xff]
        %v312 = vld [vmem:[%s269 + $0xc8] sm:$0xf]
        %v313 = vld [vmem:[%s269 + $0xcc] sm:$0xff]
        %v314 = vld [vmem:[%s269 + $0xd4] sm:$0xf]
        %v315 = vld [vmem:[%s269 + $0xd8] sm:$0xff]
        %v316 = vld [vmem:[%s269 + $0xe0] sm:$0xf]
        %v317 = vld [vmem:[%s269 + $0xe4] sm:$0xff]
        %v318 = vld [vmem:[%s269 + $0xec] sm:$0xf]
        %v319 = vld [vmem:[%s269 + $0xf0] sm:$0xff]
        %v320 = vld [vmem:[%s269 + $0xf8] sm:$0xf]
        %v321 = vld [vmem:[%s269 + $0xfc] sm:$0xff]
        %v322 = vld [vmem:[%s269 + $0x104] sm:$0xf]
        %v323 = vld [vmem:[%s269 + $0x108] sm:$0xff]
        %v324 = vld [vmem:[%s269 + $0x110] sm:$0xf]
        %v325 = vld [vmem:[%s269 + $0x114] sm:$0xff]
        %v326 = vld [vmem:[%s269 + $0x11c] sm:$0xf]
        %v327 = vld [vmem:[%s269 + $0x120] sm:$0xff]
        %v328 = vld [vmem:[%s269 + $0x128] sm:$0xf]
        %v329 = vld [vmem:[%s269 + $0x12c] sm:$0xff]
        %v330 = vld [vmem:[%s269 + $0x134] sm:$0xf]
        %v331 = vld [vmem:[%s269 + $0x138] sm:$0xff]
        %v332 = vld [vmem:[%s269 + $0x140] sm:$0xf]
        %v333 = vld [vmem:[%s269 + $0x144] sm:$0xff]
        %v334 = vld [vmem:[%s269 + $0x14c] sm:$0xf]
        %v335 = vld [vmem:[%s269 + $0x150] sm:$0xff]
        %v336 = vld [vmem:[%s269 + $0x158] sm:$0xf]
        %v337 = vld [vmem:[%s269 + $0x15c] sm:$0xff]
        %v338 = vld [vmem:[%s269 + $0x164] sm:$0xf]
        %v339 = vld [vmem:[%s269 + $0x168] sm:$0xff]
        %v340 = vld [vmem:[%s269 + $0x170] sm:$0xf]
        %v341 = vld [vmem:[%s269 + $0x174] sm:$0xff]
        %v342 = vld [vmem:[%s269 + $0x17c] sm:$0xf]
        %v343 = vld [vmem:[%s2] sm:$0xf]
        %v344 = vld [vmem:[%s2 + $0x4] sm:$0xf]
        %v345 = vld [vmem:[%s2 + $0x8] sm:$0xf]
        %v346 = vld [vmem:[%s2 + $0xc] sm:$0xf]
        %v347 = vld [vmem:[%s2 + $0x10] sm:$0xf]
        %v348 = vld [vmem:[%s2 + $0x14] sm:$0xf]
        %v349 = vld [vmem:[%s2 + $0x18] sm:$0xf]
        %v350 = vld [vmem:[%s2 + $0x1c] sm:$0xf]
        %v351 = vld [vmem:[%s2 + $0x20] sm:$0xf]
        %v352 = vld [vmem:[%s2 + $0x24] sm:$0xf]
        %v353 = vld [vmem:[%s2 + $0x28] sm:$0xf]
        %v354 = vld [vmem:[%s2 + $0x2c] sm:$0xf]
        %v355 = vld [vmem:[%s2 + $0x30] sm:$0xf]
        %v356 = vld [vmem:[%s2 + $0x34] sm:$0xf]
        %v357 = vld [vmem:[%s2 + $0x38] sm:$0xf]
        %v358 = vld [vmem:[%s2 + $0x3c] sm:$0xf]
        %v359 = vld [vmem:[%s2 + $0x40] sm:$0xf]
        %v360 = vld [vmem:[%s2 + $0x44] sm:$0xf]
        %v361 = vld [vmem:[%s2 + $0x48] sm:$0xf]
        %v362 = vld [vmem:[%s2 + $0x4c] sm:$0xf]
        %v363 = vld [vmem:[%s2 + $0x50] sm:$0xf]
        %v364 = vld [vmem:[%s2 + $0x54] sm:$0xf]
        %v365 = vld [vmem:[%s2 + $0x58] sm:$0xf]
        %v366 = vld [vmem:[%s2 + $0x5c] sm:$0xf]
        %v367 = vld [vmem:[%s2 + $0x60] sm:$0xf]
        %v368 = vld [vmem:[%s2 + $0x64] sm:$0xf]
        %v369 = vld [vmem:[%s2 + $0x68] sm:$0xf]
        %v370 = vld [vmem:[%s2 + $0x6c] sm:$0xf]
        %v371 = vld [vmem:[%s2 + $0x70] sm:$0xf]
        %v372 = vld [vmem:[%s2 + $0x74] sm:$0xf]
        %v373 = vld [vmem:[%s2 + $0x78] sm:$0xf]
        %v374 = vld [vmem:[%s2 + $0x7c] sm:$0xf]
        %v375 = vld [vmem:[%s2 + $0x80] sm:$0xf]
        %v376 = vld [vmem:[%s2 + $0x84] sm:$0xf]
        %v377 = vld [vmem:[%s2 + $0x88] sm:$0xf]
        %v378 = vld [vmem:[%s2 + $0x8c] sm:$0xf]
        %v379 = vld [vmem:[%s3] sm:$0x1]
        %v381 = vlaneseq
        %v382 = vshrl.u32 %v381, 7
        %v383 = vsub.s32 0, %v382
        %v384 = vrot.slane %v379, %v383
        %v450 = vunpack.c.l.b16 %v279
        %v451 = vunpack.c.h.b16 %v279
        %v452 = vunpack.c.l.b16 %v280
        %v453 = vunpack.c.l.b16 %v281
        %v454 = vunpack.c.h.b16 %v281
        %v455 = vunpack.c.l.b16 %v282
        %v456 = vunpack.c.l.b16 %v283
        %v457 = vunpack.c.h.b16 %v283
        %v458 = vunpack.c.l.b16 %v284
        %v459 = vunpack.c.l.b16 %v285
        %v460 = vunpack.c.h.b16 %v285
        %v461 = vunpack.c.l.b16 %v286
        %v462 = vunpack.c.l.b16 %v287
        %v463 = vunpack.c.h.b16 %v287
        %v464 = vunpack.c.l.b16 %v288
        %v465 = vunpack.c.l.b16 %v289
        %v466 = vunpack.c.h.b16 %v289
        %v467 = vunpack.c.l.b16 %v290
        %v468 = vunpack.c.l.b16 %v291
        %v469 = vunpack.c.h.b16 %v291
        %v470 = vunpack.c.l.b16 %v292
        %v471 = vunpack.c.l.b16 %v293
        %v472 = vunpack.c.h.b16 %v293
        %v473 = vunpack.c.l.b16 %v294
        %v474 = vunpack.c.l.b16 %v295
        %v475 = vunpack.c.h.b16 %v295
        %v476 = vunpack.c.l.b16 %v296
        %v477 = vunpack.c.l.b16 %v297
        %v478 = vunpack.c.h.b16 %v297
        %v479 = vunpack.c.l.b16 %v298
        %v480 = vunpack.c.l.b16 %v299
        %v481 = vunpack.c.h.b16 %v299
        %v482 = vunpack.c.l.b16 %v300
        %v483 = vunpack.c.l.b16 %v301
        %v484 = vunpack.c.h.b16 %v301
        %v485 = vunpack.c.l.b16 %v302
        %v486 = vunpack.c.l.b16 %v303
        %v487 = vunpack.c.h.b16 %v303
        %v488 = vunpack.c.l.b16 %v304
        %v489 = vunpack.c.l.b16 %v305
        %v490 = vunpack.c.h.b16 %v305
        %v491 = vunpack.c.l.b16 %v306
        %v492 = vunpack.c.l.b16 %v307
        %v493 = vunpack.c.h.b16 %v307
        %v494 = vunpack.c.l.b16 %v308
        %v495 = vunpack.c.l.b16 %v309
        %v496 = vunpack.c.h.b16 %v309
        %v497 = vunpack.c.l.b16 %v310
        %v498 = vunpack.c.l.b16 %v311
        %v499 = vunpack.c.h.b16 %v311
        %v500 = vunpack.c.l.b16 %v312
        %v501 = vunpack.c.l.b16 %v313
        %v502 = vunpack.c.h.b16 %v313
        %v503 = vunpack.c.l.b16 %v314
        %v504 = vunpack.c.l.b16 %v315
        %v505 = vunpack.c.h.b16 %v315
        %v506 = vunpack.c.l.b16 %v316
        %v507 = vunpack.c.l.b16 %v317
        %v508 = vunpack.c.h.b16 %v317
        %v509 = vunpack.c.l.b16 %v318
        %v510 = vunpack.c.l.b16 %v319
        %v511 = vunpack.c.h.b16 %v319
        %v512 = vunpack.c.l.b16 %v320
        %v513 = vunpack.c.l.b16 %v321
        %v514 = vunpack.c.h.b16 %v321
        %v515 = vunpack.c.l.b16 %v322
        %v516 = vunpack.c.l.b16 %v323
        %v517 = vunpack.c.h.b16 %v323
        %v518 = vunpack.c.l.b16 %v324
        %v519 = vunpack.c.l.b16 %v325
        %v520 = vunpack.c.h.b16 %v325
        %v521 = vunpack.c.l.b16 %v326
        %v522 = vunpack.c.l.b16 %v327
        %v523 = vunpack.c.h.b16 %v327
        %v524 = vunpack.c.l.b16 %v328
        %v525 = vunpack.c.l.b16 %v329
        %v526 = vunpack.c.h.b16 %v329
        %v527 = vunpack.c.l.b16 %v330
        %v528 = vunpack.c.l.b16 %v331
        %v529 = vunpack.c.h.b16 %v331
        %v530 = vunpack.c.l.b16 %v332
        %v531 = vunpack.c.l.b16 %v333
        %v532 = vunpack.c.h.b16 %v333
        %v533 = vunpack.c.l.b16 %v334
        %v534 = vunpack.c.l.b16 %v335
        %v535 = vunpack.c.h.b16 %v335
        %v536 = vunpack.c.l.b16 %v336
        %v537 = vunpack.c.l.b16 %v337
        %v538 = vunpack.c.h.b16 %v337
        %v539 = vunpack.c.l.b16 %v338
        %v540 = vunpack.c.l.b16 %v339
        %v541 = vunpack.c.h.b16 %v339
        %v542 = vunpack.c.l.b16 %v340
        %v543 = vunpack.c.l.b16 %v341
        %v544 = vunpack.c.h.b16 %v341
        %v545 = vunpack.c.l.b16 %v342
        %v546 = vpack.c.b16 %v453, %v450
        %v547 = vpack.c.b16 %v454, %v451
        %v548 = vpack.c.b16 %v455, %v452
        %v549 = vpack.c.b16 %v459, %v456
        %v550 = vpack.c.b16 %v460, %v457
        %v551 = vpack.c.b16 %v461, %v458
        %v552 = vpack.c.b16 %v465, %v462
        %v553 = vpack.c.b16 %v466, %v463
        %v554 = vpack.c.b16 %v467, %v464
        %v555 = vpack.c.b16 %v471, %v468
        %v556 = vpack.c.b16 %v472, %v469
        %v557 = vpack.c.b16 %v473, %v470
        %v558 = vpack.c.b16 %v477, %v474
        %v559 = vpack.c.b16 %v478, %v475
        %v560 = vpack.c.b16 %v479, %v476
        %v561 = vpack.c.b16 %v483, %v480
        %v562 = vpack.c.b16 %v484, %v481
        %v563 = vpack.c.b16 %v485, %v482
        %v564 = vpack.c.b16 %v489, %v486
        %v565 = vpack.c.b16 %v490, %v487
        %v566 = vpack.c.b16 %v491, %v488
        %v567 = vpack.c.b16 %v495, %v492
        %v568 = vpack.c.b16 %v496, %v493
        %v569 = vpack.c.b16 %v497, %v494
        %v570 = vpack.c.b16 %v501, %v498
        %v571 = vpack.c.b16 %v502, %v499
        %v572 = vpack.c.b16 %v503, %v500
        %v573 = vpack.c.b16 %v507, %v504
        %v574 = vpack.c.b16 %v508, %v505
        %v575 = vpack.c.b16 %v509, %v506
        %v576 = vpack.c.b16 %v513, %v510
        %v577 = vpack.c.b16 %v514, %v511
        %v578 = vpack.c.b16 %v515, %v512
        %v579 = vpack.c.b16 %v519, %v516
        %v580 = vpack.c.b16 %v520, %v517
        %v581 = vpack.c.b16 %v521, %v518
        %v582 = vpack.c.b16 %v525, %v522
        %v583 = vpack.c.b16 %v526, %v523
        %v584 = vpack.c.b16 %v527, %v524
        %v585 = vpack.c.b16 %v531, %v528
        %v586 = vpack.c.b16 %v532, %v529
        %v587 = vpack.c.b16 %v533, %v530
        %v588 = vpack.c.b16 %v537, %v534
        %v589 = vpack.c.b16 %v538, %v535
        %v590 = vpack.c.b16 %v539, %v536
        %v591 = vpack.c.b16 %v543, %v540
        %v592 = vpack.c.b16 %v544, %v541
        %v593 = vpack.c.b16 %v545, %v542
        %v662 = vunpack.c.l.b16 %v343
        %v663 = vunpack.c.l.b16 %v344
        %v664 = vunpack.c.l.b16 %v345
        %v665 = vunpack.c.l.b16 %v346
        %v666 = vunpack.c.l.b16 %v347
        %v667 = vunpack.c.l.b16 %v348
        %v668 = vunpack.c.l.b16 %v349
        %v669 = vunpack.c.l.b16 %v350
        %v670 = vunpack.c.l.b16 %v351
        %v671 = vunpack.c.l.b16 %v352
        %v672 = vunpack.c.l.b16 %v353
        %v673 = vunpack.c.l.b16 %v354
        %v674 = vunpack.c.l.b16 %v355
        %v675 = vunpack.c.l.b16 %v356
        %v676 = vunpack.c.l.b16 %v357
        %v677 = vunpack.c.l.b16 %v358
        %v678 = vunpack.c.l.b16 %v359
        %v679 = vunpack.c.l.b16 %v360
        %v680 = vunpack.c.l.b16 %v361
        %v681 = vunpack.c.l.b16 %v362
        %v682 = vunpack.c.l.b16 %v363
        %v683 = vunpack.c.l.b16 %v364
        %v684 = vunpack.c.l.b16 %v365
        %v685 = vunpack.c.l.b16 %v366
        %v686 = vunpack.c.l.b16 %v367
        %v687 = vunpack.c.l.b16 %v368
        %v688 = vunpack.c.l.b16 %v369
        %v689 = vunpack.c.l.b16 %v370
        %v690 = vunpack.c.l.b16 %v371
        %v691 = vunpack.c.l.b16 %v372
        %v692 = vunpack.c.l.b16 %v373
        %v693 = vunpack.c.l.b16 %v374
        %v694 = vunpack.c.l.b16 %v375
        %v695 = vunpack.c.l.b16 %v376
        %v696 = vunpack.c.l.b16 %v377
        %v697 = vunpack.c.l.b16 %v378
        %v698 = vpack.c.b16 %v663, %v662
        %v699 = vpack.c.b16 %v665, %v664
        %v700 = vpack.c.b16 %v667, %v666
        %v701 = vpack.c.b16 %v669, %v668
        %v702 = vpack.c.b16 %v671, %v670
        %v703 = vpack.c.b16 %v673, %v672
        %v704 = vpack.c.b16 %v675, %v674
        %v705 = vpack.c.b16 %v677, %v676
        %v706 = vpack.c.b16 %v679, %v678
        %v707 = vpack.c.b16 %v681, %v680
        %v708 = vpack.c.b16 %v683, %v682
        %v709 = vpack.c.b16 %v685, %v684
        %v710 = vpack.c.b16 %v687, %v686
        %v711 = vpack.c.b16 %v689, %v688
        %v712 = vpack.c.b16 %v691, %v690
        %v713 = vpack.c.b16 %v693, %v692
        %v714 = vpack.c.b16 %v695, %v694
        %v715 = vpack.c.b16 %v697, %v696
        %vm734 = vcmask 261120
        %v736 = vsel %vm734, %v548, 0
        %v739 = vsel %vm734, %v551, 0
        %v742 = vsel %vm734, %v554, 0
        %v745 = vsel %vm734, %v557, 0
        %v748 = vsel %vm734, %v560, 0
        %v751 = vsel %vm734, %v563, 0
        %v754 = vsel %vm734, %v566, 0
        %v757 = vsel %vm734, %v569, 0
        %v760 = vsel %vm734, %v572, 0
        %v763 = vsel %vm734, %v575, 0
        %v766 = vsel %vm734, %v578, 0
        %v769 = vsel %vm734, %v581, 0
        %v772 = vsel %vm734, %v584, 0
        %v775 = vsel %vm734, %v587, 0
        %v778 = vsel %vm734, %v590, 0
        %v781 = vsel %vm734, %v593, 0
        %783 = vmatprep.subr.bf16.mxu0 0
        %784 = vmatpush1.bf16.msra.mxu0 %v698
        %785 = vmatprep.subr.bf16.mxu0 0
        %786 = vmatpush1.bf16.msra.mxu0 %v699
        %787 = vmatprep.subr.bf16.mxu0 0
        %788 = vmatpush1.bf16.msra.mxu0 %v700
        %789 = vmatprep.subr.bf16.mxu0 0
        %790 = vmatpush1.bf16.msra.mxu0 %v701
        %791 = vmatprep.subr.bf16.mxu0 0
        %792 = vmatpush1.bf16.msra.mxu0 %v702
        %793 = vmatprep.subr.bf16.mxu0 0
        %794 = vmatpush1.bf16.msra.mxu0 %v703
        %795 = vmatprep.subr.bf16.mxu0 0
        %796 = vmatpush1.bf16.msra.mxu0 %v704
        %797 = vmatprep.subr.bf16.mxu0 0
        %798 = vmatpush1.bf16.msra.mxu0 %v705
        %799 = vmatprep.subr.bf16.mxu0 0
        %800 = vmatpush1.bf16.msra.mxu0 %v706
        %801 = vmatprep.subr.bf16.mxu0 0
        %802 = vmatpush1.bf16.msra.mxu0 %v707
        %803 = vmatprep.subr.bf16.mxu0 0
        %804 = vmatpush1.bf16.msra.mxu0 %v708
        %805 = vmatprep.subr.bf16.mxu0 0
        %806 = vmatpush1.bf16.msra.mxu0 %v709
        %807 = vmatprep.subr.bf16.mxu0 0
        %808 = vmatpush1.bf16.msra.mxu0 %v710
        %809 = vmatprep.subr.bf16.mxu0 0
        %810 = vmatpush1.bf16.msra.mxu0 %v711
        %811 = vmatprep.subr.bf16.mxu0 0
        %812 = vmatpush1.bf16.msra.mxu0 %v712
        %813 = vmatprep.subr.bf16.mxu0 0
        %814 = vmatpush1.bf16.msra.mxu0 %v713
        %815 = vmatprep.mubr.bf16.mxu0 %v547
        %816 = vmatmul.mubr.bf16.gmra.mrb[0].mxu0 %v546
        %v817 = vpop.f32.mrb[0].mxu0
        %v818 = vadd.f32 %v384, %v817
        %v819 = vpop.f32.mrb[0].mxu0
        %v820 = vpop.f32.mrb[0].mxu0
        %v821 = vadd.f32 %v384, %v820
        %v822 = vpop.f32.mrb[0].mxu0
        %823 = vmatprep.mubr.bf16.mxu0 %v550
        %824 = vmatmul.mubr.bf16.gmra.mrb[0].mxu0 %v549
        %v825 = vpop.f32.mrb[0].mxu0
        %v826 = vadd.f32 %v384, %v825
        %v827 = vpop.f32.mrb[0].mxu0
        %v828 = vpop.f32.mrb[0].mxu0
        %v829 = vadd.f32 %v384, %v828
        %v830 = vpop.f32.mrb[0].mxu0
        %831 = vmatprep.mubr.bf16.mxu0 %v553
        %832 = vmatmul.mubr.bf16.gmra.mrb[0].mxu0 %v552
        %v833 = vpop.f32.mrb[0].mxu0
        %v834 = vadd.f32 %v384, %v833
        %v835 = vpop.f32.mrb[0].mxu0
        %v836 = vpop.f32.mrb[0].mxu0
        %v837 = vadd.f32 %v384, %v836
        %v838 = vpop.f32.mrb[0].mxu0
        %839 = vmatprep.mubr.bf16.mxu0 %v556
        %840 = vmatmul.mubr.bf16.gmra.mrb[0].mxu0 %v555
        %v841 = vpop.f32.mrb[0].mxu0
        %v842 = vadd.f32 %v384, %v841
        %v843 = vpop.f32.mrb[0].mxu0
        %v844 = vpop.f32.mrb[0].mxu0
        %v845 = vadd.f32 %v384, %v844
        %v846 = vpop.f32.mrb[0].mxu0
        %847 = vmatprep.mubr.bf16.mxu0 %v559
        %848 = vmatmul.mubr.bf16.gmra.mrb[0].mxu0 %v558
        %v849 = vpop.f32.mrb[0].mxu0
        %v850 = vadd.f32 %v384, %v849
        %v851 = vpop.f32.mrb[0].mxu0
        %v852 = vpop.f32.mrb[0].mxu0
        %v853 = vadd.f32 %v384, %v852
        %v854 = vpop.f32.mrb[0].mxu0
        %855 = vmatprep.mubr.bf16.mxu0 %v562
        %856 = vmatmul.mubr.bf16.gmra.mrb[0].mxu0 %v561
        %v857 = vpop.f32.mrb[0].mxu0
        %v858 = vadd.f32 %v384, %v857
        %v859 = vpop.f32.mrb[0].mxu0
        %v860 = vpop.f32.mrb[0].mxu0
        %v861 = vadd.f32 %v384, %v860
        %v862 = vpop.f32.mrb[0].mxu0
        %863 = vmatprep.mubr.bf16.mxu0 %v565
        %864 = vmatmul.mubr.bf16.gmra.mrb[0].mxu0 %v564
        %v865 = vpop.f32.mrb[0].mxu0
        %v866 = vadd.f32 %v384, %v865
        %v867 = vpop.f32.mrb[0].mxu0
        %v868 = vpop.f32.mrb[0].mxu0
        %v869 = vadd.f32 %v384, %v868
        %v870 = vpop.f32.mrb[0].mxu0
        %871 = vmatprep.mubr.bf16.mxu0 %v568
        %872 = vmatmul.mubr.bf16.gmra.mrb[0].mxu0 %v567
        %v873 = vpop.f32.mrb[0].mxu0
        %v874 = vadd.f32 %v384, %v873
        %v875 = vpop.f32.mrb[0].mxu0
        %v876 = vpop.f32.mrb[0].mxu0
        %v877 = vadd.f32 %v384, %v876
        %v878 = vpop.f32.mrb[0].mxu0
        %879 = vmatprep.mubr.bf16.mxu0 %v571
        %880 = vmatmul.mubr.bf16.gmra.mrb[0].mxu0 %v570
        %v881 = vpop.f32.mrb[0].mxu0
        %v882 = vadd.f32 %v384, %v881
        %v883 = vpop.f32.mrb[0].mxu0
        %v884 = vpop.f32.mrb[0].mxu0
        %v885 = vadd.f32 %v384, %v884
        %v886 = vpop.f32.mrb[0].mxu0
        %887 = vmatprep.mubr.bf16.mxu0 %v574
        %888 = vmatmul.mubr.bf16.gmra.mrb[0].mxu0 %v573
        %v889 = vpop.f32.mrb[0].mxu0
        %v890 = vadd.f32 %v384, %v889
        %v891 = vpop.f32.mrb[0].mxu0
        %v892 = vpop.f32.mrb[0].mxu0
        %v893 = vadd.f32 %v384, %v892
        %v894 = vpop.f32.mrb[0].mxu0
        %895 = vmatprep.mubr.bf16.mxu0 %v577
        %896 = vmatmul.mubr.bf16.gmra.mrb[0].mxu0 %v576
        %v897 = vpop.f32.mrb[0].mxu0
        %v898 = vadd.f32 %v384, %v897
        %v899 = vpop.f32.mrb[0].mxu0
        %v900 = vpop.f32.mrb[0].mxu0
        %v901 = vadd.f32 %v384, %v900
        %v902 = vpop.f32.mrb[0].mxu0
        %903 = vmatprep.mubr.bf16.mxu0 %v580
        %904 = vmatmul.mubr.bf16.gmra.mrb[0].mxu0 %v579
        %v905 = vpop.f32.mrb[0].mxu0
        %v906 = vadd.f32 %v384, %v905
        %v907 = vpop.f32.mrb[0].mxu0
        %v908 = vpop.f32.mrb[0].mxu0
        %v909 = vadd.f32 %v384, %v908
        %v910 = vpop.f32.mrb[0].mxu0
        %911 = vmatprep.mubr.bf16.mxu0 %v583
        %912 = vmatmul.mubr.bf16.gmra.mrb[0].mxu0 %v582
        %v913 = vpop.f32.mrb[0].mxu0
        %v914 = vadd.f32 %v384, %v913
        %v915 = vpop.f32.mrb[0].mxu0
        %v916 = vpop.f32.mrb[0].mxu0
        %v917 = vadd.f32 %v384, %v916
        %v918 = vpop.f32.mrb[0].mxu0
        %919 = vmatprep.mubr.bf16.mxu0 %v586
        %920 = vmatmul.mubr.bf16.gmra.mrb[0].mxu0 %v585
        %v921 = vpop.f32.mrb[0].mxu0
        %v922 = vadd.f32 %v384, %v921
        %v923 = vpop.f32.mrb[0].mxu0
        %v924 = vpop.f32.mrb[0].mxu0
        %v925 = vadd.f32 %v384, %v924
        %v926 = vpop.f32.mrb[0].mxu0
        %927 = vmatprep.mubr.bf16.mxu0 %v589
        %928 = vmatmul.mubr.bf16.gmra.mrb[0].mxu0 %v588
        %v929 = vpop.f32.mrb[0].mxu0
        %v930 = vadd.f32 %v384, %v929
        %v931 = vpop.f32.mrb[0].mxu0
        %v932 = vpop.f32.mrb[0].mxu0
        %v933 = vadd.f32 %v384, %v932
        %v934 = vpop.f32.mrb[0].mxu0
        %935 = vmatprep.mubr.bf16.mxu0 %v592
        %936 = vmatmul.mubr.bf16.gmra.mrb[0].mxu0 %v591
        %v937 = vpop.f32.mrb[0].mxu0
        %v938 = vadd.f32 %v384, %v937
        %v939 = vpop.f32.mrb[0].mxu0
        %v940 = vpop.f32.mrb[0].mxu0
        %v941 = vadd.f32 %v384, %v940
        %v942 = vpop.f32.mrb[0].mxu0
        %943 = vdwg.mxu0
        %944 = vmatprep.subr.bf16.mxu0 0
        %945 = vmatpush1.bf16.msra.mxu0 %v714
        %946 = vmatprep.subr.bf16.mxu0 0
        %947 = vmatpush1.bf16.msra.mxu0 %v715
        %948 = vmatprep.subr.bf16.mxu0 0
        %949 = vmatpush1.bf16.msra.mxu0 0
        %950 = vmatprep.subr.bf16.mxu0 0
        %951 = vmatpush1.bf16.msra.mxu0 0
        %952 = vmatprep.subr.bf16.mxu0 0
        %953 = vmatpush1.bf16.msra.mxu0 0
        %954 = vmatprep.subr.bf16.mxu0 0
        %955 = vmatpush1.bf16.msra.mxu0 0
        %956 = vmatprep.subr.bf16.mxu0 0
        %957 = vmatpush1.bf16.msra.mxu0 0
        %958 = vmatprep.subr.bf16.mxu0 0
        %959 = vmatpush1.bf16.msra.mxu0 0
        %960 = vmatprep.subr.bf16.mxu0 0
        %961 = vmatpush1.bf16.msra.mxu0 0
        %962 = vmatprep.subr.bf16.mxu0 0
        %963 = vmatpush1.bf16.msra.mxu0 0
        %964 = vmatprep.subr.bf16.mxu0 0
        %965 = vmatpush1.bf16.msra.mxu0 0
        %966 = vmatprep.subr.bf16.mxu0 0
        %967 = vmatpush1.bf16.msra.mxu0 0
        %968 = vmatprep.subr.bf16.mxu0 0
        %969 = vmatpush1.bf16.msra.mxu0 0
        %970 = vmatprep.subr.bf16.mxu0 0
        %971 = vmatpush1.bf16.msra.mxu0 0
        %972 = vmatprep.subr.bf16.mxu0 0
        %973 = vmatpush1.bf16.msra.mxu0 0
        %974 = vmatprep.subr.bf16.mxu0 0
        %975 = vmatpush1.bf16.msra.mxu0 0
        %976 = vmatprep.mubr.bf16.mxu0 0
        %977 = vmatmul.mubr.bf16.gmra.mrb[0].mxu0 %v736
        %v978 = vpop.f32.mrb[0].mxu0
        %v979 = vadd.f32 %v818, %v978
        %v980 = vpop.f32.mrb[0].mxu0
        %v981 = vpop.f32.mrb[0].mxu0
        %v982 = vadd.f32 %v821, %v981
        %v983 = vpop.f32.mrb[0].mxu0
        %984 = vmatprep.mubr.bf16.mxu0 0
        %985 = vmatmul.mubr.bf16.gmra.mrb[0].mxu0 %v739
        %v986 = vpop.f32.mrb[0].mxu0
        %v987 = vadd.f32 %v826, %v986
        %v988 = vpop.f32.mrb[0].mxu0
        %v989 = vpop.f32.mrb[0].mxu0
        %v990 = vadd.f32 %v829, %v989
        %v991 = vpop.f32.mrb[0].mxu0
        %992 = vmatprep.mubr.bf16.mxu0 0
        %993 = vmatmul.mubr.bf16.gmra.mrb[0].mxu0 %v742
        %v994 = vpop.f32.mrb[0].mxu0
        %v995 = vadd.f32 %v834, %v994
        %v996 = vpop.f32.mrb[0].mxu0
        %v997 = vpop.f32.mrb[0].mxu0
        %v998 = vadd.f32 %v837, %v997
        %v999 = vpop.f32.mrb[0].mxu0
        %1000 = vmatprep.mubr.bf16.mxu0 0
        %1001 = vmatmul.mubr.bf16.gmra.mrb[0].mxu0 %v745
        %v1002 = vpop.f32.mrb[0].mxu0
        %v1003 = vadd.f32 %v842, %v1002
        %v1004 = vpop.f32.mrb[0].mxu0
        %v1005 = vpop.f32.mrb[0].mxu0
        %v1006 = vadd.f32 %v845, %v1005
        %v1007 = vpop.f32.mrb[0].mxu0
        %1008 = vmatprep.mubr.bf16.mxu0 0
        %1009 = vmatmul.mubr.bf16.gmra.mrb[0].mxu0 %v748
        %v1010 = vpop.f32.mrb[0].mxu0
        %v1011 = vadd.f32 %v850, %v1010
        %v1012 = vpop.f32.mrb[0].mxu0
        %v1013 = vpop.f32.mrb[0].mxu0
        %v1014 = vadd.f32 %v853, %v1013
        %v1015 = vpop.f32.mrb[0].mxu0
        %1016 = vmatprep.mubr.bf16.mxu0 0
        %1017 = vmatmul.mubr.bf16.gmra.mrb[0].mxu0 %v751
        %v1018 = vpop.f32.mrb[0].mxu0
        %v1019 = vadd.f32 %v858, %v1018
        %v1020 = vpop.f32.mrb[0].mxu0
        %v1021 = vpop.f32.mrb[0].mxu0
        %v1022 = vadd.f32 %v861, %v1021
        %v1023 = vpop.f32.mrb[0].mxu0
        %1024 = vmatprep.mubr.bf16.mxu0 0
        %1025 = vmatmul.mubr.bf16.gmra.mrb[0].mxu0 %v754
        %v1026 = vpop.f32.mrb[0].mxu0
        %v1027 = vadd.f32 %v866, %v1026
        %v1028 = vpop.f32.mrb[0].mxu0
        %v1029 = vpop.f32.mrb[0].mxu0
        %v1030 = vadd.f32 %v869, %v1029
        %v1031 = vpop.f32.mrb[0].mxu0
        %1032 = vmatprep.mubr.bf16.mxu0 0
        %1033 = vmatmul.mubr.bf16.gmra.mrb[0].mxu0 %v757
        %v1034 = vpop.f32.mrb[0].mxu0
        %v1035 = vadd.f32 %v874, %v1034
        %v1036 = vpop.f32.mrb[0].mxu0
        %v1037 = vpop.f32.mrb[0].mxu0
        %v1038 = vadd.f32 %v877, %v1037
        %v1039 = vpop.f32.mrb[0].mxu0
        %1040 = vmatprep.mubr.bf16.mxu0 0
        %1041 = vmatmul.mubr.bf16.gmra.mrb[0].mxu0 %v760
        %v1042 = vpop.f32.mrb[0].mxu0
        %v1043 = vadd.f32 %v882, %v1042
        %v1044 = vpop.f32.mrb[0].mxu0
        %v1045 = vpop.f32.mrb[0].mxu0
        %v1046 = vadd.f32 %v885, %v1045
        %v1047 = vpop.f32.mrb[0].mxu0
        %1048 = vmatprep.mubr.bf16.mxu0 0
        %1049 = vmatmul.mubr.bf16.gmra.mrb[0].mxu0 %v763
        %v1050 = vpop.f32.mrb[0].mxu0
        %v1051 = vadd.f32 %v890, %v1050
        %v1052 = vpop.f32.mrb[0].mxu0
        %v1053 = vpop.f32.mrb[0].mxu0
        %v1054 = vadd.f32 %v893, %v1053
        %v1055 = vpop.f32.mrb[0].mxu0
        %1056 = vmatprep.mubr.bf16.mxu0 0
        %1057 = vmatmul.mubr.bf16.gmra.mrb[0].mxu0 %v766
        %v1058 = vpop.f32.mrb[0].mxu0
        %v1059 = vadd.f32 %v898, %v1058
        %v1060 = vpop.f32.mrb[0].mxu0
        %v1061 = vpop.f32.mrb[0].mxu0
        %v1062 = vadd.f32 %v901, %v1061
        %v1063 = vpop.f32.mrb[0].mxu0
        %1064 = vmatprep.mubr.bf16.mxu0 0
        %1065 = vmatmul.mubr.bf16.gmra.mrb[0].mxu0 %v769
        %v1066 = vpop.f32.mrb[0].mxu0
        %v1067 = vadd.f32 %v906, %v1066
        %v1068 = vpop.f32.mrb[0].mxu0
        %v1069 = vpop.f32.mrb[0].mxu0
        %v1070 = vadd.f32 %v909, %v1069
        %v1071 = vpop.f32.mrb[0].mxu0
        %1072 = vmatprep.mubr.bf16.mxu0 0
        %1073 = vmatmul.mubr.bf16.gmra.mrb[0].mxu0 %v772
        %v1074 = vpop.f32.mrb[0].mxu0
        %v1075 = vadd.f32 %v914, %v1074
        %v1076 = vpop.f32.mrb[0].mxu0
        %v1077 = vpop.f32.mrb[0].mxu0
        %v1078 = vadd.f32 %v917, %v1077
        %v1079 = vpop.f32.mrb[0].mxu0
        %1080 = vmatprep.mubr.bf16.mxu0 0
        %1081 = vmatmul.mubr.bf16.gmra.mrb[0].mxu0 %v775
        %v1082 = vpop.f32.mrb[0].mxu0
        %v1083 = vadd.f32 %v922, %v1082
        %v1084 = vpop.f32.mrb[0].mxu0
        %v1085 = vpop.f32.mrb[0].mxu0
        %v1086 = vadd.f32 %v925, %v1085
        %v1087 = vpop.f32.mrb[0].mxu0
        %1088 = vmatprep.mubr.bf16.mxu0 0
        %1089 = vmatmul.mubr.bf16.gmra.mrb[0].mxu0 %v778
        %v1090 = vpop.f32.mrb[0].mxu0
        %v1091 = vadd.f32 %v930, %v1090
        %v1092 = vpop.f32.mrb[0].mxu0
        %v1093 = vpop.f32.mrb[0].mxu0
        %v1094 = vadd.f32 %v933, %v1093
        %v1095 = vpop.f32.mrb[0].mxu0
        %1096 = vmatprep.mubr.bf16.mxu0 0
        %1097 = vmatmul.mubr.bf16.gmra.mrb[0].mxu0 %v781
        %v1098 = vpop.f32.mrb[0].mxu0
        %v1099 = vadd.f32 %v938, %v1098
        %v1100 = vpop.f32.mrb[0].mxu0
        %v1101 = vpop.f32.mrb[0].mxu0
        %v1102 = vadd.f32 %v941, %v1101
        %v1103 = vpop.f32.mrb[0].mxu0
        %1104 = vdwg.mxu0
        %v1105 = vmax.f32 %v979, 0.0
        %v1106 = vmax.f32 %v982, 0.0
        %v1107 = vmax.f32 %v987, 0.0
        %v1108 = vmax.f32 %v990, 0.0
        %v1109 = vmax.f32 %v995, 0.0
        %v1110 = vmax.f32 %v998, 0.0
        %v1111 = vmax.f32 %v1003, 0.0
        %v1112 = vmax.f32 %v1006, 0.0
        %v1113 = vmax.f32 %v1011, 0.0
        %v1114 = vmax.f32 %v1014, 0.0
        %v1115 = vmax.f32 %v1019, 0.0
        %v1116 = vmax.f32 %v1022, 0.0
        %v1117 = vmax.f32 %v1027, 0.0
        %v1118 = vmax.f32 %v1030, 0.0
        %v1119 = vmax.f32 %v1035, 0.0
        %v1120 = vmax.f32 %v1038, 0.0
        %v1121 = vmax.f32 %v1043, 0.0
        %v1122 = vmax.f32 %v1046, 0.0
        %v1123 = vmax.f32 %v1051, 0.0
        %v1124 = vmax.f32 %v1054, 0.0
        %v1125 = vmax.f32 %v1059, 0.0
        %v1126 = vmax.f32 %v1062, 0.0
        %v1127 = vmax.f32 %v1067, 0.0
        %v1128 = vmax.f32 %v1070, 0.0
        %v1129 = vmax.f32 %v1075, 0.0
        %v1130 = vmax.f32 %v1078, 0.0
        %v1131 = vmax.f32 %v1083, 0.0
        %v1132 = vmax.f32 %v1086, 0.0
        %v1133 = vmax.f32 %v1091, 0.0
        %v1134 = vmax.f32 %v1094, 0.0
        %v1135 = vmax.f32 %v1099, 0.0
        %v1136 = vmax.f32 %v1102, 0.0
        %v1137 = vpack.c.bf16 %v1106, %v1105
        %v1138 = vpack.c.bf16 %v1108, %v1107
        %v1139 = vpack.c.bf16 %v1110, %v1109
        %v1140 = vpack.c.bf16 %v1112, %v1111
        %v1141 = vpack.c.bf16 %v1114, %v1113
        %v1142 = vpack.c.bf16 %v1116, %v1115
        %v1143 = vpack.c.bf16 %v1118, %v1117
        %v1144 = vpack.c.bf16 %v1120, %v1119
        %v1145 = vpack.c.bf16 %v1122, %v1121
        %v1146 = vpack.c.bf16 %v1124, %v1123
        %v1147 = vpack.c.bf16 %v1126, %v1125
        %v1148 = vpack.c.bf16 %v1128, %v1127
        %v1149 = vpack.c.bf16 %v1130, %v1129
        %v1150 = vpack.c.bf16 %v1132, %v1131
        %v1151 = vpack.c.bf16 %v1134, %v1133
        %v1152 = vpack.c.bf16 %v1136, %v1135
        %v1153 = vld [vmem:[%s4] sm:$0xf]
        %v1154 = vld [vmem:[%s4 + $0x4] sm:$0xf]
        %v1155 = vld [vmem:[%s4 + $0x8] sm:$0xf]
        %v1156 = vld [vmem:[%s4 + $0xc] sm:$0xf]
        %v1157 = vld [vmem:[%s5] sm:$0x1]
        %v1159 = vlaneseq
        %v1160 = vshrl.u32 %v1159, 7
        %v1161 = vsub.s32 0, %v1160
        %v1162 = vrot.slane %v1157, %v1161
        %v1168 = vunpack.c.l.b16 %v1153
        %v1169 = vunpack.c.l.b16 %v1154
        %v1170 = vunpack.c.l.b16 %v1155
        %v1171 = vunpack.c.l.b16 %v1156
        %v1172 = vpack.c.b16 %v1169, %v1168
        %v1173 = vpack.c.b16 %v1171, %v1170
        %v1177 = vsel %vm734, %v1137, 0
        %v1180 = vsel %vm734, %v1138, 0
        %v1183 = vsel %vm734, %v1139, 0
        %v1186 = vsel %vm734, %v1140, 0
        %v1189 = vsel %vm734, %v1141, 0
        %v1192 = vsel %vm734, %v1142, 0
        %v1195 = vsel %vm734, %v1143, 0
        %v1198 = vsel %vm734, %v1144, 0
        %v1201 = vsel %vm734, %v1145, 0
        %v1204 = vsel %vm734, %v1146, 0
        %v1207 = vsel %vm734, %v1147, 0
        %v1210 = vsel %vm734, %v1148, 0
        %v1213 = vsel %vm734, %v1149, 0
        %v1216 = vsel %vm734, %v1150, 0
        %v1219 = vsel %vm734, %v1151, 0
        %v1222 = vsel %vm734, %v1152, 0
        %1224 = vmatprep.subr.bf16.mxu0 0
        %1225 = vmatpush1.bf16.msra.mxu0 %v1172
        %1226 = vmatprep.subr.bf16.mxu0 0
        %1227 = vmatpush1.bf16.msra.mxu0 %v1173
        %1228 = vmatprep.subr.bf16.mxu0 0
        %1229 = vmatpush1.bf16.msra.mxu0 0
        %1230 = vmatprep.subr.bf16.mxu0 0
        %1231 = vmatpush1.bf16.msra.mxu0 0
        %1232 = vmatprep.subr.bf16.mxu0 0
        %1233 = vmatpush1.bf16.msra.mxu0 0
        %1234 = vmatprep.subr.bf16.mxu0 0
        %1235 = vmatpush1.bf16.msra.mxu0 0
        %1236 = vmatprep.subr.bf16.mxu0 0
        %1237 = vmatpush1.bf16.msra.mxu0 0
        %1238 = vmatprep.subr.bf16.mxu0 0
        %1239 = vmatpush1.bf16.msra.mxu0 0
        %1240 = vmatprep.subr.bf16.mxu0 0
        %1241 = vmatpush1.bf16.msra.mxu0 0
        %1242 = vmatprep.subr.bf16.mxu0 0
        %1243 = vmatpush1.bf16.msra.mxu0 0
        %1244 = vmatprep.subr.bf16.mxu0 0
        %1245 = vmatpush1.bf16.msra.mxu0 0
        %1246 = vmatprep.subr.bf16.mxu0 0
        %1247 = vmatpush1.bf16.msra.mxu0 0
        %1248 = vmatprep.subr.bf16.mxu0 0
        %1249 = vmatpush1.bf16.msra.mxu0 0
        %1250 = vmatprep.subr.bf16.mxu0 0
        %1251 = vmatpush1.bf16.msra.mxu0 0
        %1252 = vmatprep.subr.bf16.mxu0 0
        %1253 = vmatpush1.bf16.msra.mxu0 0
        %1254 = vmatprep.subr.bf16.mxu0 0
        %1255 = vmatpush1.bf16.msra.mxu0 0
        %1256 = vmatprep.mubr.bf16.mxu0 0
        %1257 = vmatmul.mubr.bf16.gmra.mrb[0].mxu0 %v1177
        %v1258 = vpop.f32.mrb[0].mxu0
        %v1259 = vadd.f32 %v1162, %v1258
        %v1260 = vpop.f32.mrb[0].mxu0
        %v1261 = vpop.f32.mrb[0].mxu0
        %v1262 = vadd.f32 %v1162, %v1261
        %v1263 = vpop.f32.mrb[0].mxu0
        %1264 = vmatprep.mubr.bf16.mxu0 0
        %1265 = vmatmul.mubr.bf16.gmra.mrb[0].mxu0 %v1180
        %v1266 = vpop.f32.mrb[0].mxu0
        %v1267 = vadd.f32 %v1162, %v1266
        %v1268 = vpop.f32.mrb[0].mxu0
        %v1269 = vpop.f32.mrb[0].mxu0
        %v1270 = vadd.f32 %v1162, %v1269
        %v1271 = vpop.f32.mrb[0].mxu0
        %1272 = vmatprep.mubr.bf16.mxu0 0
        %1273 = vmatmul.mubr.bf16.gmra.mrb[0].mxu0 %v1183
        %v1274 = vpop.f32.mrb[0].mxu0
        %v1275 = vadd.f32 %v1162, %v1274
        %v1276 = vpop.f32.mrb[0].mxu0
        %v1277 = vpop.f32.mrb[0].mxu0
        %v1278 = vadd.f32 %v1162, %v1277
        %v1279 = vpop.f32.mrb[0].mxu0
        %1280 = vmatprep.mubr.bf16.mxu0 0
        %1281 = vmatmul.mubr.bf16.gmra.mrb[0].mxu0 %v1186
        %v1282 = vpop.f32.mrb[0].mxu0
        %v1283 = vadd.f32 %v1162, %v1282
        %v1284 = vpop.f32.mrb[0].mxu0
        %v1285 = vpop.f32.mrb[0].mxu0
        %v1286 = vadd.f32 %v1162, %v1285
        %v1287 = vpop.f32.mrb[0].mxu0
        %1288 = vmatprep.mubr.bf16.mxu0 0
        %1289 = vmatmul.mubr.bf16.gmra.mrb[0].mxu0 %v1189
        %v1290 = vpop.f32.mrb[0].mxu0
        %v1291 = vadd.f32 %v1162, %v1290
        %v1292 = vpop.f32.mrb[0].mxu0
        %v1293 = vpop.f32.mrb[0].mxu0
        %v1294 = vadd.f32 %v1162, %v1293
        %v1295 = vpop.f32.mrb[0].mxu0
        %1296 = vmatprep.mubr.bf16.mxu0 0
        %1297 = vmatmul.mubr.bf16.gmra.mrb[0].mxu0 %v1192
        %v1298 = vpop.f32.mrb[0].mxu0
        %v1299 = vadd.f32 %v1162, %v1298
        %v1300 = vpop.f32.mrb[0].mxu0
        %v1301 = vpop.f32.mrb[0].mxu0
        %v1302 = vadd.f32 %v1162, %v1301
        %v1303 = vpop.f32.mrb[0].mxu0
        %1304 = vmatprep.mubr.bf16.mxu0 0
        %1305 = vmatmul.mubr.bf16.gmra.mrb[0].mxu0 %v1195
        %v1306 = vpop.f32.mrb[0].mxu0
        %v1307 = vadd.f32 %v1162, %v1306
        %v1308 = vpop.f32.mrb[0].mxu0
        %v1309 = vpop.f32.mrb[0].mxu0
        %v1310 = vadd.f32 %v1162, %v1309
        %v1311 = vpop.f32.mrb[0].mxu0
        %1312 = vmatprep.mubr.bf16.mxu0 0
        %1313 = vmatmul.mubr.bf16.gmra.mrb[0].mxu0 %v1198
        %v1314 = vpop.f32.mrb[0].mxu0
        %v1315 = vadd.f32 %v1162, %v1314
        %v1316 = vpop.f32.mrb[0].mxu0
        %v1317 = vpop.f32.mrb[0].mxu0
        %v1318 = vadd.f32 %v1162, %v1317
        %v1319 = vpop.f32.mrb[0].mxu0
        %1320 = vmatprep.mubr.bf16.mxu0 0
        %1321 = vmatmul.mubr.bf16.gmra.mrb[0].mxu0 %v1201
        %v1322 = vpop.f32.mrb[0].mxu0
        %v1323 = vadd.f32 %v1162, %v1322
        %v1324 = vpop.f32.mrb[0].mxu0
        %v1325 = vpop.f32.mrb[0].mxu0
        %v1326 = vadd.f32 %v1162, %v1325
        %v1327 = vpop.f32.mrb[0].mxu0
        %1328 = vmatprep.mubr.bf16.mxu0 0
        %1329 = vmatmul.mubr.bf16.gmra.mrb[0].mxu0 %v1204
        %v1330 = vpop.f32.mrb[0].mxu0
        %v1331 = vadd.f32 %v1162, %v1330
        %v1332 = vpop.f32.mrb[0].mxu0
        %v1333 = vpop.f32.mrb[0].mxu0
        %v1334 = vadd.f32 %v1162, %v1333
        %v1335 = vpop.f32.mrb[0].mxu0
        %1336 = vmatprep.mubr.bf16.mxu0 0
        %1337 = vmatmul.mubr.bf16.gmra.mrb[0].mxu0 %v1207
        %v1338 = vpop.f32.mrb[0].mxu0
        %v1339 = vadd.f32 %v1162, %v1338
        %v1340 = vpop.f32.mrb[0].mxu0
        %v1341 = vpop.f32.mrb[0].mxu0
        %v1342 = vadd.f32 %v1162, %v1341
        %v1343 = vpop.f32.mrb[0].mxu0
        %1344 = vmatprep.mubr.bf16.mxu0 0
        %1345 = vmatmul.mubr.bf16.gmra.mrb[0].mxu0 %v1210
        %v1346 = vpop.f32.mrb[0].mxu0
        %v1347 = vadd.f32 %v1162, %v1346
        %v1348 = vpop.f32.mrb[0].mxu0
        %v1349 = vpop.f32.mrb[0].mxu0
        %v1350 = vadd.f32 %v1162, %v1349
        %v1351 = vpop.f32.mrb[0].mxu0
        %1352 = vmatprep.mubr.bf16.mxu0 0
        %1353 = vmatmul.mubr.bf16.gmra.mrb[0].mxu0 %v1213
        %v1354 = vpop.f32.mrb[0].mxu0
        %v1355 = vadd.f32 %v1162, %v1354
        %v1356 = vpop.f32.mrb[0].mxu0
        %v1357 = vpop.f32.mrb[0].mxu0
        %v1358 = vadd.f32 %v1162, %v1357
        %v1359 = vpop.f32.mrb[0].mxu0
        %1360 = vmatprep.mubr.bf16.mxu0 0
        %1361 = vmatmul.mubr.bf16.gmra.mrb[0].mxu0 %v1216
        %v1362 = vpop.f32.mrb[0].mxu0
        %v1363 = vadd.f32 %v1162, %v1362
        %v1364 = vpop.f32.mrb[0].mxu0
        %v1365 = vpop.f32.mrb[0].mxu0
        %v1366 = vadd.f32 %v1162, %v1365
        %v1367 = vpop.f32.mrb[0].mxu0
        %1368 = vmatprep.mubr.bf16.mxu0 0
        %1369 = vmatmul.mubr.bf16.gmra.mrb[0].mxu0 %v1219
        %v1370 = vpop.f32.mrb[0].mxu0
        %v1371 = vadd.f32 %v1162, %v1370
        %v1372 = vpop.f32.mrb[0].mxu0
        %v1373 = vpop.f32.mrb[0].mxu0
        %v1374 = vadd.f32 %v1162, %v1373
        %v1375 = vpop.f32.mrb[0].mxu0
        %1376 = vmatprep.mubr.bf16.mxu0 0
        %1377 = vmatmul.mubr.bf16.gmra.mrb[0].mxu0 %v1222
        %v1378 = vpop.f32.mrb[0].mxu0
        %v1379 = vadd.f32 %v1162, %v1378
        %v1380 = vpop.f32.mrb[0].mxu0
        %v1381 = vpop.f32.mrb[0].mxu0
        %v1382 = vadd.f32 %v1162, %v1381
        %v1383 = vpop.f32.mrb[0].mxu0
        %1384 = vdwg.mxu0
        %v1385 = vld [vmem:[%s275] sm:$0xff]
        %v1386 = vld [vmem:[%s275 + $0x8] sm:$0xff]
        %v1387 = vld [vmem:[%s275 + $0x10] sm:$0xff]
        %v1388 = vld [vmem:[%s275 + $0x18] sm:$0xff]
        %v1389 = vld [vmem:[%s275 + $0x20] sm:$0xff]
        %v1390 = vld [vmem:[%s275 + $0x28] sm:$0xff]
        %v1391 = vld [vmem:[%s275 + $0x30] sm:$0xff]
        %v1392 = vld [vmem:[%s275 + $0x38] sm:$0xff]
        %v1393 = vld [vmem:[%s275 + $0x40] sm:$0xff]
        %v1394 = vld [vmem:[%s275 + $0x48] sm:$0xff]
        %v1395 = vld [vmem:[%s275 + $0x50] sm:$0xff]
        %v1396 = vld [vmem:[%s275 + $0x58] sm:$0xff]
        %v1397 = vld [vmem:[%s275 + $0x60] sm:$0xff]
        %v1398 = vld [vmem:[%s275 + $0x68] sm:$0xff]
        %v1399 = vld [vmem:[%s275 + $0x70] sm:$0xff]
        %v1400 = vld [vmem:[%s275 + $0x78] sm:$0xff]
        %v1401 = vld [vmem:[%s275 + $0x80] sm:$0xff]
        %v1402 = vld [vmem:[%s275 + $0x88] sm:$0xff]
        %v1403 = vld [vmem:[%s275 + $0x90] sm:$0xff]
        %v1404 = vld [vmem:[%s275 + $0x98] sm:$0xff]
        %v1405 = vld [vmem:[%s275 + $0xa0] sm:$0xff]
        %v1406 = vld [vmem:[%s275 + $0xa8] sm:$0xff]
        %v1407 = vld [vmem:[%s275 + $0xb0] sm:$0xff]
        %v1408 = vld [vmem:[%s275 + $0xb8] sm:$0xff]
        %v1409 = vld [vmem:[%s275 + $0xc0] sm:$0xff]
        %v1410 = vld [vmem:[%s275 + $0xc8] sm:$0xff]
        %v1411 = vld [vmem:[%s275 + $0xd0] sm:$0xff]
        %v1412 = vld [vmem:[%s275 + $0xd8] sm:$0xff]
        %v1413 = vld [vmem:[%s275 + $0xe0] sm:$0xff]
        %v1414 = vld [vmem:[%s275 + $0xe8] sm:$0xff]
        %v1415 = vld [vmem:[%s275 + $0xf0] sm:$0xff]
        %v1416 = vld [vmem:[%s275 + $0xf8] sm:$0xff]
        %v1417 = vadd.f32 %v1259, %v1385
        %v1418 = vadd.f32 %v1262, %v1386
        %v1419 = vadd.f32 %v1267, %v1387
        %v1420 = vadd.f32 %v1270, %v1388
        %v1421 = vadd.f32 %v1275, %v1389
        %v1422 = vadd.f32 %v1278, %v1390
        %v1423 = vadd.f32 %v1283, %v1391
        %v1424 = vadd.f32 %v1286, %v1392
        %v1425 = vadd.f32 %v1291, %v1393
        %v1426 = vadd.f32 %v1294, %v1394
        %v1427 = vadd.f32 %v1299, %v1395
        %v1428 = vadd.f32 %v1302, %v1396
        %v1429 = vadd.f32 %v1307, %v1397
        %v1430 = vadd.f32 %v1310, %v1398
        %v1431 = vadd.f32 %v1315, %v1399
        %v1432 = vadd.f32 %v1318, %v1400
        %v1433 = vadd.f32 %v1323, %v1401
        %v1434 = vadd.f32 %v1326, %v1402
        %v1435 = vadd.f32 %v1331, %v1403
        %v1436 = vadd.f32 %v1334, %v1404
        %v1437 = vadd.f32 %v1339, %v1405
        %v1438 = vadd.f32 %v1342, %v1406
        %v1439 = vadd.f32 %v1347, %v1407
        %v1440 = vadd.f32 %v1350, %v1408
        %v1441 = vadd.f32 %v1355, %v1409
        %v1442 = vadd.f32 %v1358, %v1410
        %v1443 = vadd.f32 %v1363, %v1411
        %v1444 = vadd.f32 %v1366, %v1412
        %v1445 = vadd.f32 %v1371, %v1413
        %v1446 = vadd.f32 %v1374, %v1414
        %v1447 = vadd.f32 %v1379, %v1415
        %v1448 = vadd.f32 %v1382, %v1416
        %v1449 = vmax.f32 %v1417, 0.0
        %v1450 = vmax.f32 %v1418, 0.0
        %v1451 = vmax.f32 %v1419, 0.0
        %v1452 = vmax.f32 %v1420, 0.0
        %v1453 = vmax.f32 %v1421, 0.0
        %v1454 = vmax.f32 %v1422, 0.0
        %v1455 = vmax.f32 %v1423, 0.0
        %v1456 = vmax.f32 %v1424, 0.0
        %v1457 = vmax.f32 %v1425, 0.0
        %v1458 = vmax.f32 %v1426, 0.0
        %v1459 = vmax.f32 %v1427, 0.0
        %v1460 = vmax.f32 %v1428, 0.0
        %v1461 = vmax.f32 %v1429, 0.0
        %v1462 = vmax.f32 %v1430, 0.0
        %v1463 = vmax.f32 %v1431, 0.0
        %v1464 = vmax.f32 %v1432, 0.0
        %v1465 = vmax.f32 %v1433, 0.0
        %v1466 = vmax.f32 %v1434, 0.0
        %v1467 = vmax.f32 %v1435, 0.0
        %v1468 = vmax.f32 %v1436, 0.0
        %v1469 = vmax.f32 %v1437, 0.0
        %v1470 = vmax.f32 %v1438, 0.0
        %v1471 = vmax.f32 %v1439, 0.0
        %v1472 = vmax.f32 %v1440, 0.0
        %v1473 = vmax.f32 %v1441, 0.0
        %v1474 = vmax.f32 %v1442, 0.0
        %v1475 = vmax.f32 %v1443, 0.0
        %v1476 = vmax.f32 %v1444, 0.0
        %v1477 = vmax.f32 %v1445, 0.0
        %v1478 = vmax.f32 %v1446, 0.0
        %v1479 = vmax.f32 %v1447, 0.0
        %v1480 = vmax.f32 %v1448, 0.0
        %1481 = vst [vmem:[%s263] sm:$0xff] %v1449
        %1482 = vst [vmem:[%s263 + $0x8] sm:$0xff] %v1450
        %1483 = vst [vmem:[%s263 + $0x10] sm:$0xff] %v1451
        %1484 = vst [vmem:[%s263 + $0x18] sm:$0xff] %v1452
        %1485 = vst [vmem:[%s263 + $0x20] sm:$0xff] %v1453
        %1486 = vst [vmem:[%s263 + $0x28] sm:$0xff] %v1454
        %1487 = vst [vmem:[%s263 + $0x30] sm:$0xff] %v1455
        %1488 = vst [vmem:[%s263 + $0x38] sm:$0xff] %v1456
        %1489 = vst [vmem:[%s263 + $0x40] sm:$0xff] %v1457
        %1490 = vst [vmem:[%s263 + $0x48] sm:$0xff] %v1458
        %1491 = vst [vmem:[%s263 + $0x50] sm:$0xff] %v1459
        %1492 = vst [vmem:[%s263 + $0x58] sm:$0xff] %v1460
        %1493 = vst [vmem:[%s263 + $0x60] sm:$0xff] %v1461
        %1494 = vst [vmem:[%s263 + $0x68] sm:$0xff] %v1462
        %1495 = vst [vmem:[%s263 + $0x70] sm:$0xff] %v1463
        %1496 = vst [vmem:[%s263 + $0x78] sm:$0xff] %v1464
        %1497 = vst [vmem:[%s263 + $0x80] sm:$0xff] %v1465
        %1498 = vst [vmem:[%s263 + $0x88] sm:$0xff] %v1466
        %1499 = vst [vmem:[%s263 + $0x90] sm:$0xff] %v1467
        %1500 = vst [vmem:[%s263 + $0x98] sm:$0xff] %v1468
        %1501 = vst [vmem:[%s263 + $0xa0] sm:$0xff] %v1469
        %1502 = vst [vmem:[%s263 + $0xa8] sm:$0xff] %v1470
        %1503 = vst [vmem:[%s263 + $0xb0] sm:$0xff] %v1471
        %1504 = vst [vmem:[%s263 + $0xb8] sm:$0xff] %v1472
        %1505 = vst [vmem:[%s263 + $0xc0] sm:$0xff] %v1473
        %1506 = vst [vmem:[%s263 + $0xc8] sm:$0xff] %v1474
        %1507 = vst [vmem:[%s263 + $0xd0] sm:$0xff] %v1475
        %1508 = vst [vmem:[%s263 + $0xd8] sm:$0xff] %v1476
        %1509 = vst [vmem:[%s263 + $0xe0] sm:$0xff] %v1477
        %1510 = vst [vmem:[%s263 + $0xe8] sm:$0xff] %v1478
        %1511 = vst [vmem:[%s263 + $0xf0] sm:$0xff] %v1479
        %1512 = vst [vmem:[%s263 + $0xf8] sm:$0xff] %v1480
        %s1513 = sand.u32 %s164, 1
        %s1514 = scalar_lea.sflag [#allocation3], %s1513
        %s1515 = sand.u32 %s164, 1
        %s1516 = smul.addr %s1515, 256
        %s1517 = scalar_lea.vmem [#allocation2], %s1516
        // Predicated region
        $region45: #{bottleneck_forward.3} parent=43 // pred_check
          %p1518 = pneg %p174
        $region46: #{bottleneck_forward.3} parent=43 // pred_check_branch
          %1520 = sbr.rel (%p1518) target = $region48
        $region47: #{bottleneck_forward.3} parent=43 // pred_region
          %s1521 = smul.u32 32, %s20
          %s1523 = ssub.s32 4096, 4096
          %1524 = vsyncadd %s1514, %s1523
          %s1525 = smul.addr %s1521, 128
          %s1526 = scalar_lea.hbm %s6, %s1525
          %s1527 = sshll.u32 %s1517, 4
          %s1528 = int_to_ptr.vmem [resolvable:$true] %s1527
          %1533 = dma.vmem_to_hbm [thread:$0]  %s1528, 4096, %s1526, %s1514, 128, 128, 8
        $region48: #{bottleneck_forward.3} parent=43 // pred_fallthru
          _
      $region44: #{bottleneck_forward.3} parent=5 // pred_fallthru
        _
      %p1534 = scmp.le.s32.totalorder 2, %s15
      // Predicated region
      $region49: #{bottleneck_forward.3} parent=5 // pred_check
        %p1535 = pneg %p1534
      $region50: #{bottleneck_forward.3} parent=5 // pred_check_branch
        %1537 = sbr.rel (%p1535) target = $region52
      $region51: #{bottleneck_forward.3} parent=5 // pred_region
        %s1538 = ssub.s32 %s15, 2
        // Predicated region
        $region53: #{bottleneck_forward.3} parent=51 // pred_check
          %p1539 = pneg %p180
        $region54: #{bottleneck_forward.3} parent=51 // pred_check_branch
          %1541 = sbr.rel (%p1539) target = $region56
        $region55: #{bottleneck_forward.3} parent=51 // pred_region
          %s1542 = sand.u32 %s165, 1
          %s1543 = scalar_lea.sflag [#allocation3], %s1542
          %s1544 = sand.u32 %s165, 1
          %s1545 = smul.addr %s1544, 256
          %s1546 = scalar_lea.vmem [#allocation2], %s1545
          %1547 = dma.done %s1543, 4096
        $region56: #{bottleneck_forward.3} parent=51 // pred_fallthru
          _
      $region52: #{bottleneck_forward.3} parent=5 // pred_fallthru
        _
    $region6: #{bottleneck_forward.3} parent=1 // loop_footer
      %s19 = sadd.s32 1, %s15
    $region7: #{bottleneck_forward.3} parent=1 // loop_footer_branch
      %14 = sbr.rel target = $region3
    $region8: #{bottleneck_forward.3} parent=1 // loop_exit
      _
    %1548 = vsyncpa [#allocation3], 1
    %s1549 = scalar_lea.sflag [#allocation3], 1
    %1550 = vsyncpa %s1549, 1

</llo_original>
